<compile_context>
chip_gen: v7x
topology: tpu7x:2x2x1
jax: 0.10.0
libtpu: 0.0.40
codegen_flags: <defaults>
</compile_context>

<pallas_src>
import functools

import jax
import jax.numpy as jnp
from jax.experimental import pallas as pl
from jax.experimental.pallas import tpu as pltpu

LANE = 128      # vreg lane width
SUBLANE = 8     # f32 sublane count
TB_MAX = 512    # batch-tile rows; >=512 amortizes the ~0.35 us/grid-step cost


def _round_up(n, m):
    return ((n + m - 1) // m) * m


def _make_fused_mlp_kernel(num_layers, k_dims, matmul_dtype):
    """Kernel computing the whole MLP for one batch tile; emits every preactivation.

    k_dims[i] is the (sublane-aligned) contraction width of layer i; weights are
    NOT K-padded to 128, only the output dim is lane-padded.  matmul_dtype is
    the MXU operand dtype (f32, or bf16 on v6e/v7x); accumulation is always f32
    and bias-add / ReLU stay in f32 (v5e's VPU has no bf16).
    """

    def kernel(*refs):
        x_ref = refs[0]
        w_refs = refs[1:1 + num_layers]
        b_refs = refs[1 + num_layers:1 + 2 * num_layers]
        out_refs = refs[1 + 2 * num_layers:]

        r = x_ref[...].astype(jnp.float32)
        for i in range(num_layers):
            if i > 0:
                # ReLU on the true contraction lanes only; static lane slice
                # stays within one (8,128) tile -> pure vreg op, no VMEM copy.
                r = jnp.maximum(r[:, :k_dims[i]], 0.0)
            lhs = r.astype(matmul_dtype)
            r = jnp.dot(lhs, w_refs[i][...], preferred_element_type=jnp.float32)
            r = r + b_refs[i][...].astype(jnp.float32)
            out_refs[i][...] = r.astype(out_refs[i].dtype)  # lane-dense store

    return kernel


def init_params(key, layer_units):
    """Deterministic nn.Linear-style init: U(-1/sqrt(fan_in), 1/sqrt(fan_in))."""
    params = []
    for i in range(len(layer_units) - 1):
        fan_in, fan_out = layer_units[i], layer_units[i + 1]
        key, kw, kb = jax.random.split(key, 3)
        bound = 1.0 / float(fan_in) ** 0.5
        w = jax.random.uniform(kw, (fan_in, fan_out), jnp.float32, -bound, bound)
        b = jax.random.uniform(kb, (1, fan_out), jnp.float32, -bound, bound)
        params.append((w, b))
    return params


def pad_params(params, weight_dtype=jnp.float32):
    """Pad only the OUTPUT (lane) dim of each layer to 128; K stays un-padded
    (just sublane-aligned to 8).

    Padded weight rows/columns and bias columns are zero, so padded activation
    lanes stay exactly zero through ReLU and later matmuls; slicing recovers
    the reference values.  Weights may be stored in bf16 (MXU-native on
    v6e/v7x); biases stay f32 so the bias-add/ReLU path is f32 on every chip.
    """
    padded, out_dims, k_dims = [], [], []
    for w, b in params:
        fan_in, fan_out = w.shape
        in_p = _round_up(fan_in, SUBLANE)    # sublane-align K only (no 128 pad)
        out_p = _round_up(fan_out, LANE)     # lane-dense N for unmasked vst
        wp = jnp.zeros((in_p, out_p), weight_dtype)
        wp = wp.at[:fan_in, :fan_out].set(w.astype(weight_dtype))
        bp = jnp.zeros((1, out_p), jnp.float32).at[:, :fan_out].set(b)
        padded.append((wp, bp))
        out_dims.append(fan_out)
        k_dims.append(in_p)
    return padded, tuple(out_dims), tuple(k_dims)


@functools.partial(jax.jit, static_argnames=("out_dims", "k_dims"))
def _fused_forward(padded_params, out_dims, k_dims, x):
    num_layers = len(padded_params)
    w_list = [w for w, _ in padded_params]
    b_list = [b for _, b in padded_params]
    matmul_dtype = w_list[0].dtype

    batch, in_dim = x.shape
    # One-time feature pad if the first layer's sublane-aligned K is wider.
    if in_dim < k_dims[0]:
        x = jnp.pad(x, ((0, 0), (0, k_dims[0] - in_dim)))

    # Batch tile: >=TB_MAX rows when possible, always a multiple of 8 sublanes.
    tb = TB_MAX if batch >= TB_MAX else _round_up(batch, SUBLANE)
    padded_batch = _round_up(batch, tb)
    if padded_batch != batch:
        x = jnp.pad(x, ((0, padded_batch - batch), (0, 0)))
    grid = (padded_batch // tb,)

    x_spec = pl.BlockSpec((tb, x.shape[1]), lambda i: (i, 0))
    # Constant index_maps: weights/biases DMA'd once, resident across steps.
    w_specs = [pl.BlockSpec(w.shape, lambda i: (0, 0)) for w in w_list]
    b_specs = [pl.BlockSpec(b.shape, lambda i: (0, 0)) for b in b_list]
    out_specs = tuple(
        pl.BlockSpec((tb, w.shape[1]), lambda i: (i, 0)) for w in w_list
    )
    out_shapes = tuple(
        jax.ShapeDtypeStruct((padded_batch, w.shape[1]), jnp.float32)
        for w in w_list
    )

    padded_outs = pl.pallas_call(
        _make_fused_mlp_kernel(num_layers, k_dims, matmul_dtype),
        out_shape=out_shapes,
        grid=grid,
        in_specs=[x_spec] + w_specs + b_specs,
        out_specs=out_specs,
        compiler_params=pltpu.CompilerParams(
            dimension_semantics=("parallel",)   # megacore split on v7x
        ),
    )(x, *w_list, *b_list)

    # Un-pad batch rows + lane columns back to the module's true widths.
    # These slices compile into this same jit executable (no extra dispatches).
    preacts = [o[:batch, :d] for o, d in zip(padded_outs, out_dims)]
    return preacts


def baseline_net_forward(padded_params, out_dims, k_dims, x, time=None):
    """Mirrors BaselineNet.forward: returns (r, None, preactivations)."""
    del time  # unused in the reference forward as well
    preacts = _fused_forward(padded_params, out_dims, k_dims, x)
    return preacts[-1], None, list(preacts)


def _reference_forward(params, x):
    """Plain-JAX f32 reference for correctness checking."""
    preacts = []
    r = x
    for layer_i, (w, b) in enumerate(params):
        if layer_i > 0:
            r = jnp.maximum(r, 0.0)
        r = r @ w + b
        preacts.append(r)
    return r, None, preacts


if __name__ == "__main__":
    # Module config: input_dim=(64,), n_units=32, n_layers=2, activation=ReLU,
    # layer_type=nn.Linear  ->  layer_units = [64, 32, 32, 10]
    input_dim = (64,)
    n_units = 32
    n_layers = 2
    layer_units = [64] + [n_units] * n_layers + [10]

    key = jax.random.PRNGKey(0)
    key, kp, kx = jax.random.split(key, 3)
    params = init_params(kp, layer_units)

    # The workload is launch/DMA-latency bound at tiny batches; size the demo
    # batch so the grid + resident-weight pipeline path is actually exercised
    # (still only ~256 KB of input).
    batch = 1024
    x = jax.random.normal(kx, (batch, layer_units[0]), jnp.float32)
    time = jnp.zeros((batch,), jnp.float32)  # unused, as in the PyTorch module

    r_ref, _, preacts_ref = _reference_forward(params, x)

    # ---- f32 path: exact-ish check against the pure-JAX reference ----------
    pp32, out_dims, k_dims = pad_params(params, jnp.float32)
    r, none_out, preacts = baseline_net_forward(pp32, out_dims, k_dims, x, time)
    jax.block_until_ready(r)
    jax.block_until_ready(preacts)

    assert none_out is None
    assert len(preacts) == len(params)
    for a, b in zip(preacts, preacts_ref):
        assert a.shape == b.shape and a.dtype == b.dtype
        assert jnp.allclose(a, b, atol=1e-4, rtol=1e-4)
    assert jnp.allclose(r, r_ref, atol=1e-4, rtol=1e-4)

    # ---- bf16-weight path (MXU-native on v6e/v7x): relaxed tolerance -------
    pp_bf, out_dims_bf, k_dims_bf = pad_params(params, jnp.bfloat16)
    r_bf, _, preacts_bf = baseline_net_forward(pp_bf, out_dims_bf, k_dims_bf, x, time)
    jax.block_until_ready(r_bf)
    for a, b in zip(preacts_bf, preacts_ref):
        assert a.shape == b.shape
        assert jnp.allclose(a, b, atol=5e-2, rtol=5e-2)
    assert jnp.allclose(r_bf, r_ref, atol=5e-2, rtol=5e-2)

    print("KERNEL_OK")
</pallas_src>

<mosaic_0001>
module attributes {stable_mosaic.version = 11 : i64} {
  func.func @kernel(%arg0: i32, %arg1: memref<512x64xf32, #tpu.memory_space<vmem>>, %arg2: memref<64x128xf32, #tpu.memory_space<vmem>>, %arg3: memref<32x128xf32, #tpu.memory_space<vmem>>, %arg4: memref<32x128xf32, #tpu.memory_space<vmem>>, %arg5: memref<1x128xf32, #tpu.memory_space<vmem>>, %arg6: memref<1x128xf32, #tpu.memory_space<vmem>>, %arg7: memref<1x128xf32, #tpu.memory_space<vmem>>, %arg8: memref<512x128xf32, #tpu.memory_space<vmem>>, %arg9: memref<512x128xf32, #tpu.memory_space<vmem>>, %arg10: memref<512x128xf32, #tpu.memory_space<vmem>>) attributes {dimension_semantics = [#tpu.dimension_semantics<parallel>], iteration_bounds = array<i64: 2>, scalar_prefetch = 0 : i64, scratch_operands = 0 : i64, tpu.core_type = #tpu.core_type<tc>, window_params = [{transform_indices = @transform_0, window_bounds = array<i64: 512, 64>}, {pipeline_mode = #tpu.pipeline_mode<synchronous>, transform_indices = @transform_1, window_bounds = array<i64: 64, 128>}, {pipeline_mode = #tpu.pipeline_mode<synchronous>, transform_indices = @transform_2, window_bounds = array<i64: 32, 128>}, {pipeline_mode = #tpu.pipeline_mode<synchronous>, transform_indices = @transform_3, window_bounds = array<i64: 32, 128>}, {pipeline_mode = #tpu.pipeline_mode<synchronous>, transform_indices = @transform_4, window_bounds = array<i64: 1, 128>}, {pipeline_mode = #tpu.pipeline_mode<synchronous>, transform_indices = @transform_5, window_bounds = array<i64: 1, 128>}, {pipeline_mode = #tpu.pipeline_mode<synchronous>, transform_indices = @transform_6, window_bounds = array<i64: 1, 128>}, {transform_indices = @transform_7, window_bounds = array<i64: 512, 128>}, {transform_indices = @transform_8, window_bounds = array<i64: 512, 128>}, {transform_indices = @transform_9, window_bounds = array<i64: 512, 128>}]} {
    %c0 = arith.constant 0 : index
    %c0_0 = arith.constant 0 : index
    %0 = vector.load %arg1[%c0, %c0_0] : memref<512x64xf32, #tpu.memory_space<vmem>>, vector<512x64xf32>
    %c0_1 = arith.constant 0 : index
    %c0_2 = arith.constant 0 : index
    %1 = vector.load %arg2[%c0_1, %c0_2] : memref<64x128xf32, #tpu.memory_space<vmem>>, vector<64x128xf32>
    %cst = arith.constant dense<0.000000e+00> : vector<512x128xf32>
    %2 = tpu.matmul %0, %1, %cst {dimension_numbers = #tpu.dot_dimension_numbers<[1], [0], [0], [1], [0, 0, 1, 1], [], []>} : vector<512x64xf32>, vector<64x128xf32>, vector<512x128xf32> -> vector<512x128xf32>
    %c0_3 = arith.constant 0 : index
    %c0_4 = arith.constant 0 : index
    %3 = vector.load %arg5[%c0_3, %c0_4] : memref<1x128xf32, #tpu.memory_space<vmem>>, vector<1x128xf32>
    %4 = vector.broadcast %3 : vector<1x128xf32> to vector<512x128xf32>
    %5 = arith.addf %2, %4 : vector<512x128xf32>
    %c0_5 = arith.constant 0 : index
    %c0_6 = arith.constant 0 : index
    %6 = vector.load %arg8[%c0_5, %c0_6] : memref<512x128xf32, #tpu.memory_space<vmem>>, vector<512x128xf32>
    tpu.vector_store %arg8[%c0_5, %c0_6], %5 {strides = array<i32>} : memref<512x128xf32, #tpu.memory_space<vmem>>, vector<512x128xf32>,
    %7 = vector.extract_strided_slice %5 {offsets = [0, 0], sizes = [512, 32], strides = [1, 1]} : vector<512x128xf32> to vector<512x32xf32>
    %cst_7 = arith.constant 0.000000e+00 : f32
    %8 = vector.broadcast %cst_7 : f32 to vector<512x32xf32>
    %9 = arith.maximumf %7, %8 : vector<512x32xf32>
    %c0_8 = arith.constant 0 : index
    %c0_9 = arith.constant 0 : index
    %10 = vector.load %arg3[%c0_8, %c0_9] : memref<32x128xf32, #tpu.memory_space<vmem>>, vector<32x128xf32>
    %cst_10 = arith.constant dense<0.000000e+00> : vector<512x128xf32>
    %11 = tpu.matmul %9, %10, %cst_10 {dimension_numbers = #tpu.dot_dimension_numbers<[1], [0], [0], [1], [0, 0, 1, 1], [], []>} : vector<512x32xf32>, vector<32x128xf32>, vector<512x128xf32> -> vector<512x128xf32>
    %c0_11 = arith.constant 0 : index
    %c0_12 = arith.constant 0 : index
    %12 = vector.load %arg6[%c0_11, %c0_12] : memref<1x128xf32, #tpu.memory_space<vmem>>, vector<1x128xf32>
    %13 = vector.broadcast %12 : vector<1x128xf32> to vector<512x128xf32>
    %14 = arith.addf %11, %13 : vector<512x128xf32>
    %c0_13 = arith.constant 0 : index
    %c0_14 = arith.constant 0 : index
    %15 = vector.load %arg9[%c0_13, %c0_14] : memref<512x128xf32, #tpu.memory_space<vmem>>, vector<512x128xf32>
    tpu.vector_store %arg9[%c0_13, %c0_14], %14 {strides = array<i32>} : memref<512x128xf32, #tpu.memory_space<vmem>>, vector<512x128xf32>,
    %16 = vector.extract_strided_slice %14 {offsets = [0, 0], sizes = [512, 32], strides = [1, 1]} : vector<512x128xf32> to vector<512x32xf32>
    %cst_15 = arith.constant 0.000000e+00 : f32
    %17 = vector.broadcast %cst_15 : f32 to vector<512x32xf32>
    %18 = arith.maximumf %16, %17 : vector<512x32xf32>
    %c0_16 = arith.constant 0 : index
    %c0_17 = arith.constant 0 : index
    %19 = vector.load %arg4[%c0_16, %c0_17] : memref<32x128xf32, #tpu.memory_space<vmem>>, vector<32x128xf32>
    %cst_18 = arith.constant dense<0.000000e+00> : vector<512x128xf32>
    %20 = tpu.matmul %18, %19, %cst_18 {dimension_numbers = #tpu.dot_dimension_numbers<[1], [0], [0], [1], [0, 0, 1, 1], [], []>} : vector<512x32xf32>, vector<32x128xf32>, vector<512x128xf32> -> vector<512x128xf32>
    %c0_19 = arith.constant 0 : index
    %c0_20 = arith.constant 0 : index
    %21 = vector.load %arg7[%c0_19, %c0_20] : memref<1x128xf32, #tpu.memory_space<vmem>>, vector<1x128xf32>
    %22 = vector.broadcast %21 : vector<1x128xf32> to vector<512x128xf32>
    %23 = arith.addf %20, %22 : vector<512x128xf32>
    %c0_21 = arith.constant 0 : index
    %c0_22 = arith.constant 0 : index
    %24 = vector.load %arg10[%c0_21, %c0_22] : memref<512x128xf32, #tpu.memory_space<vmem>>, vector<512x128xf32>
    tpu.vector_store %arg10[%c0_21, %c0_22], %23 {strides = array<i32>} : memref<512x128xf32, #tpu.memory_space<vmem>>, vector<512x128xf32>,
    return
  }
  func.func @transform_0(%arg0: i32) -> (i32, i32) {
    %c0_i32 = arith.constant 0 : i32
    %c0_i32_0 = arith.constant 0 : i32
    return %arg0, %c0_i32 : i32, i32
  }
  func.func @transform_1(%arg0: i32) -> (i32, i32) {
    %c0_i32 = arith.constant 0 : i32
    %c0_i32_0 = arith.constant 0 : i32
    %c0_i32_1 = arith.constant 0 : i32
    return %c0_i32, %c0_i32_0 : i32, i32
  }
  func.func @transform_2(%arg0: i32) -> (i32, i32) {
    %c0_i32 = arith.constant 0 : i32
    %c0_i32_0 = arith.constant 0 : i32
    %c0_i32_1 = arith.constant 0 : i32
    return %c0_i32, %c0_i32_0 : i32, i32
  }
  func.func @transform_3(%arg0: i32) -> (i32, i32) {
    %c0_i32 = arith.constant 0 : i32
    %c0_i32_0 = arith.constant 0 : i32
    %c0_i32_1 = arith.constant 0 : i32
    return %c0_i32, %c0_i32_0 : i32, i32
  }
  func.func @transform_4(%arg0: i32) -> (i32, i32) {
    %c0_i32 = arith.constant 0 : i32
    %c0_i32_0 = arith.constant 0 : i32
    %c0_i32_1 = arith.constant 0 : i32
    return %c0_i32, %c0_i32_0 : i32, i32
  }
  func.func @transform_5(%arg0: i32) -> (i32, i32) {
    %c0_i32 = arith.constant 0 : i32
    %c0_i32_0 = arith.constant 0 : i32
    %c0_i32_1 = arith.constant 0 : i32
    return %c0_i32, %c0_i32_0 : i32, i32
  }
  func.func @transform_6(%arg0: i32) -> (i32, i32) {
    %c0_i32 = arith.constant 0 : i32
    %c0_i32_0 = arith.constant 0 : i32
    %c0_i32_1 = arith.constant 0 : i32
    return %c0_i32, %c0_i32_0 : i32, i32
  }
  func.func @transform_7(%arg0: i32) -> (i32, i32) {
    %c0_i32 = arith.constant 0 : i32
    %c0_i32_0 = arith.constant 0 : i32
    return %arg0, %c0_i32 : i32, i32
  }
  func.func @transform_8(%arg0: i32) -> (i32, i32) {
    %c0_i32 = arith.constant 0 : i32
    %c0_i32_0 = arith.constant 0 : i32
    return %arg0, %c0_i32 : i32, i32
  }
  func.func @transform_9(%arg0: i32) -> (i32, i32) {
    %c0_i32 = arith.constant 0 : i32
    %c0_i32_0 = arith.constant 0 : i32
    return %arg0, %c0_i32 : i32, i32
  }
}

</mosaic_0001>

<llo_original>
// kernel: _fused_forward.1
$region0: #{_fused_forward.1}
  #allocation0 [shape = 'u32[]', space=smem, size = 0x4, offset = 0x4, fixed_abs, tag = 'smem constant byte address 0x4 - core index']
  #allocation1 [shape = 'u32[144,128]{1,0:T(1,128)}', space=vmem, size = 0x12000, scoped, tag = 'internal scratch']
  %s0 = inlined_call_operand.vmem [shape: f32[1024,64], index: 0, kind: input, shape index: {}]
  %s1 = inlined_call_operand.vmem [shape: f32[64,128], index: 1, kind: input, shape index: {}]
  %s2 = inlined_call_operand.vmem [shape: f32[32,128], index: 2, kind: input, shape index: {}]
  %s3 = inlined_call_operand.vmem [shape: f32[32,128], index: 3, kind: input, shape index: {}]
  %s4 = inlined_call_operand.vmem [shape: f32[1,128], index: 4, kind: input, shape index: {}]
  %s5 = inlined_call_operand.vmem [shape: f32[1,128], index: 5, kind: input, shape index: {}]
  %s6 = inlined_call_operand.vmem [shape: f32[1,128], index: 6, kind: input, shape index: {}]
  %s7 = inlined_call_operand.vmem [shape: f32[1024,128], index: 7, kind: output, shape index: {0}]
  %s8 = inlined_call_operand.vmem [shape: f32[1024,128], index: 8, kind: output, shape index: {1}]
  %s9 = inlined_call_operand.vmem [shape: f32[1024,128], index: 9, kind: output, shape index: {2}]
  %10 = xla_tuple %s7, %s8, %s9
  %s11 = sld [smem:[#allocation0]]
  $region77: #{_fused_forward.1} parent=0
    _
  %s13 = ssub.s32 1, %s11
  %s14 = scalar_select 0, %s13, %s11
  loop: start=0, step=1, limit=4
  $region2: #{_fused_forward.1} parent=0 // loop_pre_header
    _
  $region3: #{_fused_forward.1} parent=0 // loop_header
    %s16 = sphi 0, %s20
    %p17 = scmp.ge.s32.totalorder %s16, 4
    %s26 = sphi 0, %s28
    %s29 = sphi 0, %s26
    %s30 = sphi 0, %s29
    %s46 = sphi 0, %s30
    %s50 = sphi 0, %s50
    %s52 = sphi 0, %s50
    %s53 = sphi 0, %s52
    %s67 = sphi 0, %s53
    %s71 = sphi 0, %s71
    %s73 = sphi 0, %s71
    %s74 = sphi 0, %s73
    %s88 = sphi 0, %s74
    %s92 = sphi 0, %s92
    %s94 = sphi 0, %s92
    %s95 = sphi 0, %s94
    %s109 = sphi 0, %s95
    %s113 = sphi 0, %s113
    %s115 = sphi 0, %s113
    %s116 = sphi 0, %s115
    %s130 = sphi 0, %s116
    %s134 = sphi 0, %s134
    %s136 = sphi 0, %s134
    %s137 = sphi 0, %s136
    %s151 = sphi 0, %s137
    %s155 = sphi 0, %s155
    %s157 = sphi 0, %s155
    %s158 = sphi 0, %s157
    %s172 = sphi 0, %s158
    %s178 = sphi 0, %s180
    %s181 = sphi 0, %s178
    %s182 = sphi 0, %s181
    %s198 = sphi 0, %s182
    %s204 = sphi 0, %s206
    %s207 = sphi 0, %s204
    %s208 = sphi 0, %s207
    %s224 = sphi 0, %s208
    %s230 = sphi 0, %s232
    %s233 = sphi 0, %s230
    %s234 = sphi 0, %s233
    %s250 = sphi 0, %s234
  $region4: #{_fused_forward.1} parent=0 // loop_header_branch
    %19 = sbr.rel (%p17) target = $region8
  $region5: #{_fused_forward.1} parent=0 // loop_body
    %s21 = ssub.s32 %s16, 1
    %s22 = ssub.s32 %s16, 2
    %s23 = sadd.s32 %s16, 1
    %s24 = ssub.s32 %s16, %s23
    %p25 = scmp.eq.s32.totalorder %s24, 0
    %s27 = sadd.s32 %s26, 1
    %s28 = scalar_select %p25, %s26, %s27
    %p31 = pneg %p25
    %p32 = scmp.eq.s32.totalorder %s16, 1
    %p33 = por %p31, %p32
    %p34 = scmp.ne.s32.totalorder %s26, %s29
    %p35 = scmp.eq.s32.totalorder %s16, 0
    %p36 = por %p34, %p35
    %p37 = scmp.ne.s32.totalorder %s26, %s29
    %p38 = scmp.eq.s32.totalorder %s21, 1
    %p39 = por %p37, %p38
    %p40 = scmp.ne.s32.totalorder %s29, %s30
    %p41 = scmp.eq.s32.totalorder %s21, 0
    %p42 = por %p40, %p41
    %p43 = scmp.ne.s32.totalorder %s29, %s30
    %p44 = scmp.eq.s32.totalorder %s22, 1
    %p45 = por %p43, %p44
    %p47 = scmp.ne.s32.totalorder %s30, %s46
    %p48 = scmp.eq.s32.totalorder %s22, 0
    %p49 = por %p47, %p48
    %s51 = sadd.s32 %s50, 1
    %p54 = scmp.eq.s32.totalorder %s16, 1
    %p55 = scmp.ne.s32.totalorder %s50, %s52
    %p56 = scmp.eq.s32.totalorder %s16, 0
    %p57 = por %p55, %p56
    %p58 = scmp.ne.s32.totalorder %s50, %s52
    %p59 = scmp.eq.s32.totalorder %s21, 1
    %p60 = por %p58, %p59
    %p61 = scmp.ne.s32.totalorder %s52, %s53
    %p62 = scmp.eq.s32.totalorder %s21, 0
    %p63 = por %p61, %p62
    %p64 = scmp.ne.s32.totalorder %s52, %s53
    %p65 = scmp.eq.s32.totalorder %s22, 1
    %p66 = por %p64, %p65
    %p68 = scmp.ne.s32.totalorder %s53, %s67
    %p69 = scmp.eq.s32.totalorder %s22, 0
    %p70 = por %p68, %p69
    %s72 = sadd.s32 %s71, 1
    %p75 = scmp.eq.s32.totalorder %s16, 1
    %p76 = scmp.ne.s32.totalorder %s71, %s73
    %p77 = scmp.eq.s32.totalorder %s16, 0
    %p78 = por %p76, %p77
    %p79 = scmp.ne.s32.totalorder %s71, %s73
    %p80 = scmp.eq.s32.totalorder %s21, 1
    %p81 = por %p79, %p80
    %p82 = scmp.ne.s32.totalorder %s73, %s74
    %p83 = scmp.eq.s32.totalorder %s21, 0
    %p84 = por %p82, %p83
    %p85 = scmp.ne.s32.totalorder %s73, %s74
    %p86 = scmp.eq.s32.totalorder %s22, 1
    %p87 = por %p85, %p86
    %p89 = scmp.ne.s32.totalorder %s74, %s88
    %p90 = scmp.eq.s32.totalorder %s22, 0
    %p91 = por %p89, %p90
    %s93 = sadd.s32 %s92, 1
    %p96 = scmp.eq.s32.totalorder %s16, 1
    %p97 = scmp.ne.s32.totalorder %s92, %s94
    %p98 = scmp.eq.s32.totalorder %s16, 0
    %p99 = por %p97, %p98
    %p100 = scmp.ne.s32.totalorder %s92, %s94
    %p101 = scmp.eq.s32.totalorder %s21, 1
    %p102 = por %p100, %p101
    %p103 = scmp.ne.s32.totalorder %s94, %s95
    %p104 = scmp.eq.s32.totalorder %s21, 0
    %p105 = por %p103, %p104
    %p106 = scmp.ne.s32.totalorder %s94, %s95
    %p107 = scmp.eq.s32.totalorder %s22, 1
    %p108 = por %p106, %p107
    %p110 = scmp.ne.s32.totalorder %s95, %s109
    %p111 = scmp.eq.s32.totalorder %s22, 0
    %p112 = por %p110, %p111
    %s114 = sadd.s32 %s113, 1
    %p117 = scmp.eq.s32.totalorder %s16, 1
    %p118 = scmp.ne.s32.totalorder %s113, %s115
    %p119 = scmp.eq.s32.totalorder %s16, 0
    %p120 = por %p118, %p119
    %p121 = scmp.ne.s32.totalorder %s113, %s115
    %p122 = scmp.eq.s32.totalorder %s21, 1
    %p123 = por %p121, %p122
    %p124 = scmp.ne.s32.totalorder %s115, %s116
    %p125 = scmp.eq.s32.totalorder %s21, 0
    %p126 = por %p124, %p125
    %p127 = scmp.ne.s32.totalorder %s115, %s116
    %p128 = scmp.eq.s32.totalorder %s22, 1
    %p129 = por %p127, %p128
    %p131 = scmp.ne.s32.totalorder %s116, %s130
    %p132 = scmp.eq.s32.totalorder %s22, 0
    %p133 = por %p131, %p132
    %s135 = sadd.s32 %s134, 1
    %p138 = scmp.eq.s32.totalorder %s16, 1
    %p139 = scmp.ne.s32.totalorder %s134, %s136
    %p140 = scmp.eq.s32.totalorder %s16, 0
    %p141 = por %p139, %p140
    %p142 = scmp.ne.s32.totalorder %s134, %s136
    %p143 = scmp.eq.s32.totalorder %s21, 1
    %p144 = por %p142, %p143
    %p145 = scmp.ne.s32.totalorder %s136, %s137
    %p146 = scmp.eq.s32.totalorder %s21, 0
    %p147 = por %p145, %p146
    %p148 = scmp.ne.s32.totalorder %s136, %s137
    %p149 = scmp.eq.s32.totalorder %s22, 1
    %p150 = por %p148, %p149
    %p152 = scmp.ne.s32.totalorder %s137, %s151
    %p153 = scmp.eq.s32.totalorder %s22, 0
    %p154 = por %p152, %p153
    %s156 = sadd.s32 %s155, 1
    %p159 = scmp.eq.s32.totalorder %s16, 1
    %p160 = scmp.ne.s32.totalorder %s155, %s157
    %p161 = scmp.eq.s32.totalorder %s16, 0
    %p162 = por %p160, %p161
    %p163 = scmp.ne.s32.totalorder %s155, %s157
    %p164 = scmp.eq.s32.totalorder %s21, 1
    %p165 = por %p163, %p164
    %p166 = scmp.ne.s32.totalorder %s157, %s158
    %p167 = scmp.eq.s32.totalorder %s21, 0
    %p168 = por %p166, %p167
    %p169 = scmp.ne.s32.totalorder %s157, %s158
    %p170 = scmp.eq.s32.totalorder %s22, 1
    %p171 = por %p169, %p170
    %p173 = scmp.ne.s32.totalorder %s158, %s172
    %p174 = scmp.eq.s32.totalorder %s22, 0
    %p175 = por %p173, %p174
    %s176 = ssub.s32 %s16, %s23
    %p177 = scmp.eq.s32.totalorder %s176, 0
    %s179 = sadd.s32 %s178, 1
    %s180 = scalar_select %p177, %s178, %s179
    %p183 = pneg %p177
    %p184 = scmp.eq.s32.totalorder %s16, 1
    %p185 = por %p183, %p184
    %p186 = scmp.ne.s32.totalorder %s178, %s181
    %p187 = scmp.eq.s32.totalorder %s16, 0
    %p188 = por %p186, %p187
    %p189 = scmp.ne.s32.totalorder %s178, %s181
    %p190 = scmp.eq.s32.totalorder %s21, 1
    %p191 = por %p189, %p190
    %p192 = scmp.ne.s32.totalorder %s181, %s182
    %p193 = scmp.eq.s32.totalorder %s21, 0
    %p194 = por %p192, %p193
    %p195 = scmp.ne.s32.totalorder %s181, %s182
    %p196 = scmp.eq.s32.totalorder %s22, 1
    %p197 = por %p195, %p196
    %p199 = scmp.ne.s32.totalorder %s182, %s198
    %p200 = scmp.eq.s32.totalorder %s22, 0
    %p201 = por %p199, %p200
    %s202 = ssub.s32 %s16, %s23
    %p203 = scmp.eq.s32.totalorder %s202, 0
    %s205 = sadd.s32 %s204, 1
    %s206 = scalar_select %p203, %s204, %s205
    %p209 = pneg %p203
    %p210 = scmp.eq.s32.totalorder %s16, 1
    %p211 = por %p209, %p210
    %p212 = scmp.ne.s32.totalorder %s204, %s207
    %p213 = scmp.eq.s32.totalorder %s16, 0
    %p214 = por %p212, %p213
    %p215 = scmp.ne.s32.totalorder %s204, %s207
    %p216 = scmp.eq.s32.totalorder %s21, 1
    %p217 = por %p215, %p216
    %p218 = scmp.ne.s32.totalorder %s207, %s208
    %p219 = scmp.eq.s32.totalorder %s21, 0
    %p220 = por %p218, %p219
    %p221 = scmp.ne.s32.totalorder %s207, %s208
    %p222 = scmp.eq.s32.totalorder %s22, 1
    %p223 = por %p221, %p222
    %p225 = scmp.ne.s32.totalorder %s208, %s224
    %p226 = scmp.eq.s32.totalorder %s22, 0
    %p227 = por %p225, %p226
    %s228 = ssub.s32 %s16, %s23
    %p229 = scmp.eq.s32.totalorder %s228, 0
    %s231 = sadd.s32 %s230, 1
    %s232 = scalar_select %p229, %s230, %s231
    %p235 = pneg %p229
    %p236 = scmp.eq.s32.totalorder %s16, 1
    %p237 = por %p235, %p236
    %p238 = scmp.ne.s32.totalorder %s230, %s233
    %p239 = scmp.eq.s32.totalorder %s16, 0
    %p240 = por %p238, %p239
    %p241 = scmp.ne.s32.totalorder %s230, %s233
    %p242 = scmp.eq.s32.totalorder %s21, 1
    %p243 = por %p241, %p242
    %p244 = scmp.ne.s32.totalorder %s233, %s234
    %p245 = scmp.eq.s32.totalorder %s21, 0
    %p246 = por %p244, %p245
    %p247 = scmp.ne.s32.totalorder %s233, %s234
    %p248 = scmp.eq.s32.totalorder %s22, 1
    %p249 = por %p247, %p248
    %p251 = scmp.ne.s32.totalorder %s234, %s250
    %p252 = scmp.eq.s32.totalorder %s22, 0
    %p253 = por %p251, %p252
    %p254 = scmp.le.s32.totalorder 1, %s16
    %p255 = scmp.lt.s32.totalorder %s16, 3
    %p256 = pnand %p254, %p255
    %p257 = pneg %p256
    // Predicated region
    $region9: #{_fused_forward.1} parent=5 // pred_check
      _
    $region10: #{_fused_forward.1} parent=5 // pred_check_branch
      %259 = sbr.rel (%p256) target = $region12
    $region11: #{_fused_forward.1} parent=5 // pred_region
      %s260 = ssub.s32 %s16, 1
      // Predicated region
      $region13: #{_fused_forward.1} parent=11 // pred_check
        %p261 = pneg %p63
      $region14: #{_fused_forward.1} parent=11 // pred_check_branch
        %263 = sbr.rel (%p261) target = $region16
      $region15: #{_fused_forward.1} parent=11 // pred_region
        _
      $region16: #{_fused_forward.1} parent=11 // pred_fallthru
        _
      // Predicated region
      $region17: #{_fused_forward.1} parent=11 // pred_check
        %p264 = pneg %p84
      $region18: #{_fused_forward.1} parent=11 // pred_check_branch
        %266 = sbr.rel (%p264) target = $region20
      $region19: #{_fused_forward.1} parent=11 // pred_region
        _
      $region20: #{_fused_forward.1} parent=11 // pred_fallthru
        _
      // Predicated region
      $region21: #{_fused_forward.1} parent=11 // pred_check
        %p267 = pneg %p105
      $region22: #{_fused_forward.1} parent=11 // pred_check_branch
        %269 = sbr.rel (%p267) target = $region24
      $region23: #{_fused_forward.1} parent=11 // pred_region
        _
      $region24: #{_fused_forward.1} parent=11 // pred_fallthru
        _
      // Predicated region
      $region25: #{_fused_forward.1} parent=11 // pred_check
        %p270 = pneg %p126
      $region26: #{_fused_forward.1} parent=11 // pred_check_branch
        %272 = sbr.rel (%p270) target = $region28
      $region27: #{_fused_forward.1} parent=11 // pred_region
        _
      $region28: #{_fused_forward.1} parent=11 // pred_fallthru
        _
      // Predicated region
      $region29: #{_fused_forward.1} parent=11 // pred_check
        %p273 = pneg %p147
      $region30: #{_fused_forward.1} parent=11 // pred_check_branch
        %275 = sbr.rel (%p273) target = $region32
      $region31: #{_fused_forward.1} parent=11 // pred_region
        _
      $region32: #{_fused_forward.1} parent=11 // pred_fallthru
        _
      // Predicated region
      $region33: #{_fused_forward.1} parent=11 // pred_check
        %p276 = pneg %p168
      $region34: #{_fused_forward.1} parent=11 // pred_check_branch
        %278 = sbr.rel (%p276) target = $region36
      $region35: #{_fused_forward.1} parent=11 // pred_region
        _
      $region36: #{_fused_forward.1} parent=11 // pred_fallthru
        _
    $region12: #{_fused_forward.1} parent=5 // pred_fallthru
      _
    %p279 = scmp.lt.s32.totalorder %s16, 2
    // Predicated region
    $region37: #{_fused_forward.1} parent=5 // pred_check
      %p280 = pneg %p279
    $region38: #{_fused_forward.1} parent=5 // pred_check_branch
      %282 = sbr.rel (%p280) target = $region40
    $region39: #{_fused_forward.1} parent=5 // pred_region
      // Predicated region
      $region41: #{_fused_forward.1} parent=39 // pred_check
        %p283 = pneg %p36
      $region42: #{_fused_forward.1} parent=39 // pred_check_branch
        %285 = sbr.rel (%p283) target = $region44
      $region43: #{_fused_forward.1} parent=39 // pred_region
        %s286 = smul.u32 64, %s16
        %p287 = scmp.lt.s32.totalorder %s286, 127
        %s288 = scalar_select %p287, %s286, 127
        %s289 = smul.addr %s288, 8
        %s290 = scalar_lea.vmem %s0, %s289
        %s291 = smul.u32 64, %s16
      $region44: #{_fused_forward.1} parent=39 // pred_fallthru
        _
    $region40: #{_fused_forward.1} parent=5 // pred_fallthru
      _
    %p292 = scmp.le.s32.totalorder 1, %s16
    %p293 = scmp.lt.s32.totalorder %s16, 3
    %p294 = pnand %p292, %p293
    %p295 = pneg %p294
    // Predicated region
    $region45: #{_fused_forward.1} parent=5 // pred_check
      _
    $region46: #{_fused_forward.1} parent=5 // pred_check_branch
      %297 = sbr.rel (%p294) target = $region48
    $region47: #{_fused_forward.1} parent=5 // pred_region
      %s298 = ssub.s32 %s16, 1
      %s299 = smul.u32 64, %s21
      %p300 = scmp.lt.s32.totalorder %s299, 127
      %s301 = scalar_select %p300, %s299, 127
      %s302 = smul.addr %s301, 8
      %s303 = scalar_lea.vmem %s0, %s302
      %p304 = pneg %p42
      %p305 = pneg %p39
      %p306 = pneg %p63
      %p307 = pneg %p60
      %p308 = pneg %p84
      %p309 = pneg %p81
      %p310 = pneg %p105
      %p311 = pneg %p102
      %p312 = pneg %p126
      %p313 = pneg %p123
      %p314 = pneg %p147
      %p315 = pneg %p144
      %p316 = pneg %p168
      %p317 = pneg %p165
      %p318 = pneg %p194
      %p319 = pneg %p191
      %s320 = smul.u32 64, %s21
      %p321 = scmp.lt.s32.totalorder %s320, 127
      %s322 = scalar_select %p321, %s320, 127
      %s323 = smul.addr %s322, 8
      %s324 = scalar_lea.vmem %s7, %s323
      %p325 = pneg %p220
      %p326 = pneg %p217
      %s327 = smul.u32 64, %s21
      %p328 = scmp.lt.s32.totalorder %s327, 127
      %s329 = scalar_select %p328, %s327, 127
      %s330 = smul.addr %s329, 8
      %s331 = scalar_lea.vmem %s8, %s330
      %p332 = pneg %p246
      %p333 = pneg %p243
      %s334 = smul.u32 64, %s21
      %p335 = scmp.lt.s32.totalorder %s334, 127
      %s336 = scalar_select %p335, %s334, 127
      %s337 = smul.addr %s336, 8
      %s338 = scalar_lea.vmem %s9, %s337
      %s339 = smul.u32 64, %s21
      %p340 = scmp.lt.s32.totalorder %s339, 127
      %s341 = scalar_select %p340, %s339, 127
      %s342 = smul.addr %s341, 8
      %s343 = scalar_lea.vmem %s0, %s342
      %s344 = smul.u32 64, %s21
      %s345 = smul.u32 64, %s21
      %p346 = scmp.lt.s32.totalorder %s345, 127
      %s347 = scalar_select %p346, %s345, 127
      %s348 = smul.addr %s347, 8
      %s349 = scalar_lea.vmem %s7, %s348
      %s350 = smul.u32 64, %s21
      %s351 = smul.u32 64, %s21
      %p352 = scmp.lt.s32.totalorder %s351, 127
      %s353 = scalar_select %p352, %s351, 127
      %s354 = smul.addr %s353, 8
      %s355 = scalar_lea.vmem %s8, %s354
      %s356 = smul.u32 64, %s21
      %s357 = smul.u32 64, %s21
      %p358 = scmp.lt.s32.totalorder %s357, 127
      %s359 = scalar_select %p358, %s357, 127
      %s360 = smul.addr %s359, 8
      %s361 = scalar_lea.vmem %s9, %s360
      %s362 = smul.u32 64, %s21
      %v363 = vld [vmem:[%s343] sm:$0xff]
      %v364 = vld [vmem:[%s343 + $0x8] sm:$0xff]
      %v365 = vld [vmem:[%s343 + $0x10] sm:$0xff]
      %v366 = vld [vmem:[%s343 + $0x18] sm:$0xff]
      %v367 = vld [vmem:[%s343 + $0x20] sm:$0xff]
      %v368 = vld [vmem:[%s343 + $0x28] sm:$0xff]
      %v369 = vld [vmem:[%s343 + $0x30] sm:$0xff]
      %v370 = vld [vmem:[%s343 + $0x38] sm:$0xff]
      %v371 = vld [vmem:[%s343 + $0x40] sm:$0xff]
      %v372 = vld [vmem:[%s343 + $0x48] sm:$0xff]
      %v373 = vld [vmem:[%s343 + $0x50] sm:$0xff]
      %v374 = vld [vmem:[%s343 + $0x58] sm:$0xff]
      %v375 = vld [vmem:[%s343 + $0x60] sm:$0xff]
      %v376 = vld [vmem:[%s343 + $0x68] sm:$0xff]
      %v377 = vld [vmem:[%s343 + $0x70] sm:$0xff]
      %v378 = vld [vmem:[%s343 + $0x78] sm:$0xff]
      %v379 = vld [vmem:[%s343 + $0x80] sm:$0xff]
      %v380 = vld [vmem:[%s343 + $0x88] sm:$0xff]
      %v381 = vld [vmem:[%s343 + $0x90] sm:$0xff]
      %v382 = vld [vmem:[%s343 + $0x98] sm:$0xff]
      %v383 = vld [vmem:[%s343 + $0xa0] sm:$0xff]
      %v384 = vld [vmem:[%s343 + $0xa8] sm:$0xff]
      %v385 = vld [vmem:[%s343 + $0xb0] sm:$0xff]
      %v386 = vld [vmem:[%s343 + $0xb8] sm:$0xff]
      %v387 = vld [vmem:[%s343 + $0xc0] sm:$0xff]
      %v388 = vld [vmem:[%s343 + $0xc8] sm:$0xff]
      %v389 = vld [vmem:[%s343 + $0xd0] sm:$0xff]
      %v390 = vld [vmem:[%s343 + $0xd8] sm:$0xff]
      %v391 = vld [vmem:[%s343 + $0xe0] sm:$0xff]
      %v392 = vld [vmem:[%s343 + $0xe8] sm:$0xff]
      %v393 = vld [vmem:[%s343 + $0xf0] sm:$0xff]
      %v394 = vld [vmem:[%s343 + $0xf8] sm:$0xff]
      %v395 = vld [vmem:[%s343 + $0x100] sm:$0xff]
      %v396 = vld [vmem:[%s343 + $0x108] sm:$0xff]
      %v397 = vld [vmem:[%s343 + $0x110] sm:$0xff]
      %v398 = vld [vmem:[%s343 + $0x118] sm:$0xff]
      %v399 = vld [vmem:[%s343 + $0x120] sm:$0xff]
      %v400 = vld [vmem:[%s343 + $0x128] sm:$0xff]
      %v401 = vld [vmem:[%s343 + $0x130] sm:$0xff]
      %v402 = vld [vmem:[%s343 + $0x138] sm:$0xff]
      %v403 = vld [vmem:[%s343 + $0x140] sm:$0xff]
      %v404 = vld [vmem:[%s343 + $0x148] sm:$0xff]
      %v405 = vld [vmem:[%s343 + $0x150] sm:$0xff]
      %v406 = vld [vmem:[%s343 + $0x158] sm:$0xff]
      %v407 = vld [vmem:[%s343 + $0x160] sm:$0xff]
      %v408 = vld [vmem:[%s343 + $0x168] sm:$0xff]
      %v409 = vld [vmem:[%s343 + $0x170] sm:$0xff]
      %v410 = vld [vmem:[%s343 + $0x178] sm:$0xff]
      %v411 = vld [vmem:[%s343 + $0x180] sm:$0xff]
      %v412 = vld [vmem:[%s343 + $0x188] sm:$0xff]
      %v413 = vld [vmem:[%s343 + $0x190] sm:$0xff]
      %v414 = vld [vmem:[%s343 + $0x198] sm:$0xff]
      %v415 = vld [vmem:[%s343 + $0x1a0] sm:$0xff]
      %v416 = vld [vmem:[%s343 + $0x1a8] sm:$0xff]
      %v417 = vld [vmem:[%s343 + $0x1b0] sm:$0xff]
      %v418 = vld [vmem:[%s343 + $0x1b8] sm:$0xff]
      %v419 = vld [vmem:[%s343 + $0x1c0] sm:$0xff]
      %v420 = vld [vmem:[%s343 + $0x1c8] sm:$0xff]
      %v421 = vld [vmem:[%s343 + $0x1d0] sm:$0xff]
      %v422 = vld [vmem:[%s343 + $0x1d8] sm:$0xff]
      %v423 = vld [vmem:[%s343 + $0x1e0] sm:$0xff]
      %v424 = vld [vmem:[%s343 + $0x1e8] sm:$0xff]
      %v425 = vld [vmem:[%s343 + $0x1f0] sm:$0xff]
      %v426 = vld [vmem:[%s343 + $0x1f8] sm:$0xff]
      %v427 = vld [vmem:[%s1] sm:$0xff]
      %v428 = vld [vmem:[%s1 + $0x8] sm:$0xff]
      %v429 = vld [vmem:[%s1 + $0x10] sm:$0xff]
      %v430 = vld [vmem:[%s1 + $0x18] sm:$0xff]
      %v431 = vld [vmem:[%s1 + $0x20] sm:$0xff]
      %v432 = vld [vmem:[%s1 + $0x28] sm:$0xff]
      %v433 = vld [vmem:[%s1 + $0x30] sm:$0xff]
      %v434 = vld [vmem:[%s1 + $0x38] sm:$0xff]
      %v435 = vld [vmem:[%s4] sm:$0x1]
      %v437 = vlaneseq
      %v438 = vshrl.u32 %v437, 7
      %v439 = vsub.s32 0, %v438
      %v440 = vrot.slane %v435, %v439
      %vm442 = vcmask 523264
      %v444 = vsel %vm442, %v363, 0
      %v447 = vsel %vm442, %v364, 0
      %v450 = vsel %vm442, %v365, 0
      %v453 = vsel %vm442, %v366, 0
      %v456 = vsel %vm442, %v367, 0
      %v459 = vsel %vm442, %v368, 0
      %v462 = vsel %vm442, %v369, 0
      %v465 = vsel %vm442, %v370, 0
      %v468 = vsel %vm442, %v371, 0
      %v471 = vsel %vm442, %v372, 0
      %v474 = vsel %vm442, %v373, 0
      %v477 = vsel %vm442, %v374, 0
      %v480 = vsel %vm442, %v375, 0
      %v483 = vsel %vm442, %v376, 0
      %v486 = vsel %vm442, %v377, 0
      %v489 = vsel %vm442, %v378, 0
      %v492 = vsel %vm442, %v379, 0
      %v495 = vsel %vm442, %v380, 0
      %v498 = vsel %vm442, %v381, 0
      %v501 = vsel %vm442, %v382, 0
      %v504 = vsel %vm442, %v383, 0
      %v507 = vsel %vm442, %v384, 0
      %v510 = vsel %vm442, %v385, 0
      %v513 = vsel %vm442, %v386, 0
      %v516 = vsel %vm442, %v387, 0
      %v519 = vsel %vm442, %v388, 0
      %v522 = vsel %vm442, %v389, 0
      %v525 = vsel %vm442, %v390, 0
      %v528 = vsel %vm442, %v391, 0
      %v531 = vsel %vm442, %v392, 0
      %v534 = vsel %vm442, %v393, 0
      %v537 = vsel %vm442, %v394, 0
      %v540 = vsel %vm442, %v395, 0
      %v543 = vsel %vm442, %v396, 0
      %v546 = vsel %vm442, %v397, 0
      %v549 = vsel %vm442, %v398, 0
      %v552 = vsel %vm442, %v399, 0
      %v555 = vsel %vm442, %v400, 0
      %v558 = vsel %vm442, %v401, 0
      %v561 = vsel %vm442, %v402, 0
      %v564 = vsel %vm442, %v403, 0
      %v567 = vsel %vm442, %v404, 0
      %v570 = vsel %vm442, %v405, 0
      %v573 = vsel %vm442, %v406, 0
      %v576 = vsel %vm442, %v407, 0
      %v579 = vsel %vm442, %v408, 0
      %v582 = vsel %vm442, %v409, 0
      %v585 = vsel %vm442, %v410, 0
      %v588 = vsel %vm442, %v411, 0
      %v591 = vsel %vm442, %v412, 0
      %v594 = vsel %vm442, %v413, 0
      %v597 = vsel %vm442, %v414, 0
      %v600 = vsel %vm442, %v415, 0
      %v603 = vsel %vm442, %v416, 0
      %v606 = vsel %vm442, %v417, 0
      %v609 = vsel %vm442, %v418, 0
      %v612 = vsel %vm442, %v419, 0
      %v615 = vsel %vm442, %v420, 0
      %v618 = vsel %vm442, %v421, 0
      %v621 = vsel %vm442, %v422, 0
      %v624 = vsel %vm442, %v423, 0
      %v627 = vsel %vm442, %v424, 0
      %v630 = vsel %vm442, %v425, 0
      %v633 = vsel %vm442, %v426, 0
      %635 = vmatprep.subr.mxu0 0.0
      %636 = vmatpush1.msra.mxu0 %v427
      %637 = vmatprep.subr.mxu0 0.0
      %638 = vmatpush1.msra.mxu0 %v428
      %639 = vmatprep.subr.mxu0 0.0
      %640 = vmatpush1.msra.mxu0 %v429
      %641 = vmatprep.subr.mxu0 0.0
      %642 = vmatpush1.msra.mxu0 %v430
      %643 = vmatprep.subr.mxu0 0.0
      %644 = vmatpush1.msra.mxu0 %v431
      %645 = vmatprep.subr.mxu0 0.0
      %646 = vmatpush1.msra.mxu0 %v432
      %647 = vmatprep.subr.mxu0 0.0
      %648 = vmatpush1.msra.mxu0 %v433
      %649 = vmatprep.subr.mxu0 0.0
      %650 = vmatpush1.msra.mxu0 %v434
      %651 = vmatprep.subr.mxu0 0.0
      %652 = vmatpush1.msra.mxu0 0.0
      %653 = vmatprep.subr.mxu0 0.0
      %654 = vmatpush1.msra.mxu0 0.0
      %655 = vmatprep.subr.mxu0 0.0
      %656 = vmatpush1.msra.mxu0 0.0
      %657 = vmatprep.subr.mxu0 0.0
      %658 = vmatpush1.msra.mxu0 0.0
      %659 = vmatprep.subr.mxu0 0.0
      %660 = vmatpush1.msra.mxu0 0.0
      %661 = vmatprep.subr.mxu0 0.0
      %662 = vmatpush1.msra.mxu0 0.0
      %663 = vmatprep.subr.mxu0 0.0
      %664 = vmatpush1.msra.mxu0 0.0
      %665 = vmatprep.subr.mxu0 0.0
      %666 = vmatpush1.msra.mxu0 0.0
      %667 = vmatprep.subr.mxu0 0.0
      %668 = vmatpush1.msra.mxu0 0.0
      %669 = vmatprep.subr.mxu0 0.0
      %670 = vmatpush1.msra.mxu0 0.0
      %671 = vmatprep.subr.mxu0 0.0
      %672 = vmatpush1.msra.mxu0 0.0
      %673 = vmatprep.subr.mxu0 0.0
      %674 = vmatpush1.msra.mxu0 0.0
      %675 = vmatprep.subr.mxu0 0.0
      %676 = vmatpush1.msra.mxu0 0.0
      %677 = vmatprep.subr.mxu0 0.0
      %678 = vmatpush1.msra.mxu0 0.0
      %679 = vmatprep.subr.mxu0 0.0
      %680 = vmatpush1.msra.mxu0 0.0
      %681 = vmatprep.subr.mxu0 0.0
      %682 = vmatpush1.msra.mxu0 0.0
      %683 = vmatprep.subr.mxu0 0.0
      %684 = vmatpush1.msra.mxu0 0.0
      %685 = vmatprep.subr.mxu0 0.0
      %686 = vmatpush1.msra.mxu0 0.0
      %687 = vmatprep.subr.mxu0 0.0
      %688 = vmatpush1.msra.mxu0 0.0
      %689 = vmatprep.subr.mxu0 0.0
      %690 = vmatpush1.msra.mxu0 0.0
      %691 = vmatprep.subr.mxu0 0.0
      %692 = vmatpush1.msra.mxu0 0.0
      %693 = vmatprep.subr.mxu0 0.0
      %694 = vmatpush1.msra.mxu0 0.0
      %695 = vmatprep.subr.mxu0 0.0
      %696 = vmatpush1.msra.mxu0 0.0
      %697 = vmatprep.subr.mxu0 0.0
      %698 = vmatpush1.msra.mxu0 0.0
      %699 = vmatprep.mubr.f32.mxu0 0.0
      %700 = vmatmul.mubr.f32.gmra.mrb[0].mxu0 %v444
      %v701 = vpop.f32.mrb[0].mxu0
      %v702 = vadd.f32 %v440, %v701
      %v703 = vpop.f32.mrb[0].mxu0
      %704 = vmatprep.mubr.f32.mxu0 0.0
      %705 = vmatmul.mubr.f32.gmra.mrb[0].mxu0 %v447
      %v706 = vpop.f32.mrb[0].mxu0
      %v707 = vadd.f32 %v440, %v706
      %v708 = vpop.f32.mrb[0].mxu0
      %709 = vmatprep.mubr.f32.mxu0 0.0
      %710 = vmatmul.mubr.f32.gmra.mrb[0].mxu0 %v450
      %v711 = vpop.f32.mrb[0].mxu0
      %v712 = vadd.f32 %v440, %v711
      %v713 = vpop.f32.mrb[0].mxu0
      %714 = vmatprep.mubr.f32.mxu0 0.0
      %715 = vmatmul.mubr.f32.gmra.mrb[0].mxu0 %v453
      %v716 = vpop.f32.mrb[0].mxu0
      %v717 = vadd.f32 %v440, %v716
      %v718 = vpop.f32.mrb[0].mxu0
      %719 = vmatprep.mubr.f32.mxu0 0.0
      %720 = vmatmul.mubr.f32.gmra.mrb[0].mxu0 %v456
      %v721 = vpop.f32.mrb[0].mxu0
      %v722 = vadd.f32 %v440, %v721
      %v723 = vpop.f32.mrb[0].mxu0
      %724 = vmatprep.mubr.f32.mxu0 0.0
      %725 = vmatmul.mubr.f32.gmra.mrb[0].mxu0 %v459
      %v726 = vpop.f32.mrb[0].mxu0
      %v727 = vadd.f32 %v440, %v726
      %v728 = vpop.f32.mrb[0].mxu0
      %729 = vmatprep.mubr.f32.mxu0 0.0
      %730 = vmatmul.mubr.f32.gmra.mrb[0].mxu0 %v462
      %v731 = vpop.f32.mrb[0].mxu0
      %v732 = vadd.f32 %v440, %v731
      %v733 = vpop.f32.mrb[0].mxu0
      %734 = vmatprep.mubr.f32.mxu0 0.0
      %735 = vmatmul.mubr.f32.gmra.mrb[0].mxu0 %v465
      %v736 = vpop.f32.mrb[0].mxu0
      %v737 = vadd.f32 %v440, %v736
      %v738 = vpop.f32.mrb[0].mxu0
      %739 = vmatprep.mubr.f32.mxu0 0.0
      %740 = vmatmul.mubr.f32.gmra.mrb[0].mxu0 %v468
      %v741 = vpop.f32.mrb[0].mxu0
      %v742 = vadd.f32 %v440, %v741
      %v743 = vpop.f32.mrb[0].mxu0
      %744 = vmatprep.mubr.f32.mxu0 0.0
      %745 = vmatmul.mubr.f32.gmra.mrb[0].mxu0 %v471
      %v746 = vpop.f32.mrb[0].mxu0
      %v747 = vadd.f32 %v440, %v746
      %v748 = vpop.f32.mrb[0].mxu0
      %749 = vmatprep.mubr.f32.mxu0 0.0
      %750 = vmatmul.mubr.f32.gmra.mrb[0].mxu0 %v474
      %v751 = vpop.f32.mrb[0].mxu0
      %v752 = vadd.f32 %v440, %v751
      %v753 = vpop.f32.mrb[0].mxu0
      %754 = vmatprep.mubr.f32.mxu0 0.0
      %755 = vmatmul.mubr.f32.gmra.mrb[0].mxu0 %v477
      %v756 = vpop.f32.mrb[0].mxu0
      %v757 = vadd.f32 %v440, %v756
      %v758 = vpop.f32.mrb[0].mxu0
      %759 = vmatprep.mubr.f32.mxu0 0.0
      %760 = vmatmul.mubr.f32.gmra.mrb[0].mxu0 %v480
      %v761 = vpop.f32.mrb[0].mxu0
      %v762 = vadd.f32 %v440, %v761
      %v763 = vpop.f32.mrb[0].mxu0
      %764 = vmatprep.mubr.f32.mxu0 0.0
      %765 = vmatmul.mubr.f32.gmra.mrb[0].mxu0 %v483
      %v766 = vpop.f32.mrb[0].mxu0
      %v767 = vadd.f32 %v440, %v766
      %v768 = vpop.f32.mrb[0].mxu0
      %769 = vmatprep.mubr.f32.mxu0 0.0
      %770 = vmatmul.mubr.f32.gmra.mrb[0].mxu0 %v486
      %v771 = vpop.f32.mrb[0].mxu0
      %v772 = vadd.f32 %v440, %v771
      %v773 = vpop.f32.mrb[0].mxu0
      %774 = vmatprep.mubr.f32.mxu0 0.0
      %775 = vmatmul.mubr.f32.gmra.mrb[0].mxu0 %v489
      %v776 = vpop.f32.mrb[0].mxu0
      %v777 = vadd.f32 %v440, %v776
      %v778 = vpop.f32.mrb[0].mxu0
      %779 = vmatprep.mubr.f32.mxu0 0.0
      %780 = vmatmul.mubr.f32.gmra.mrb[0].mxu0 %v492
      %v781 = vpop.f32.mrb[0].mxu0
      %v782 = vadd.f32 %v440, %v781
      %v783 = vpop.f32.mrb[0].mxu0
      %784 = vmatprep.mubr.f32.mxu0 0.0
      %785 = vmatmul.mubr.f32.gmra.mrb[0].mxu0 %v495
      %v786 = vpop.f32.mrb[0].mxu0
      %v787 = vadd.f32 %v440, %v786
      %v788 = vpop.f32.mrb[0].mxu0
      %789 = vmatprep.mubr.f32.mxu0 0.0
      %790 = vmatmul.mubr.f32.gmra.mrb[0].mxu0 %v498
      %v791 = vpop.f32.mrb[0].mxu0
      %v792 = vadd.f32 %v440, %v791
      %v793 = vpop.f32.mrb[0].mxu0
      %794 = vmatprep.mubr.f32.mxu0 0.0
      %795 = vmatmul.mubr.f32.gmra.mrb[0].mxu0 %v501
      %v796 = vpop.f32.mrb[0].mxu0
      %v797 = vadd.f32 %v440, %v796
      %v798 = vpop.f32.mrb[0].mxu0
      %799 = vmatprep.mubr.f32.mxu0 0.0
      %800 = vmatmul.mubr.f32.gmra.mrb[0].mxu0 %v504
      %v801 = vpop.f32.mrb[0].mxu0
      %v802 = vadd.f32 %v440, %v801
      %v803 = vpop.f32.mrb[0].mxu0
      %804 = vmatprep.mubr.f32.mxu0 0.0
      %805 = vmatmul.mubr.f32.gmra.mrb[0].mxu0 %v507
      %v806 = vpop.f32.mrb[0].mxu0
      %v807 = vadd.f32 %v440, %v806
      %v808 = vpop.f32.mrb[0].mxu0
      %809 = vmatprep.mubr.f32.mxu0 0.0
      %810 = vmatmul.mubr.f32.gmra.mrb[0].mxu0 %v510
      %v811 = vpop.f32.mrb[0].mxu0
      %v812 = vadd.f32 %v440, %v811
      %v813 = vpop.f32.mrb[0].mxu0
      %814 = vmatprep.mubr.f32.mxu0 0.0
      %815 = vmatmul.mubr.f32.gmra.mrb[0].mxu0 %v513
      %v816 = vpop.f32.mrb[0].mxu0
      %v817 = vadd.f32 %v440, %v816
      %v818 = vpop.f32.mrb[0].mxu0
      %819 = vmatprep.mubr.f32.mxu0 0.0
      %820 = vmatmul.mubr.f32.gmra.mrb[0].mxu0 %v516
      %v821 = vpop.f32.mrb[0].mxu0
      %v822 = vadd.f32 %v440, %v821
      %v823 = vpop.f32.mrb[0].mxu0
      %824 = vmatprep.mubr.f32.mxu0 0.0
      %825 = vmatmul.mubr.f32.gmra.mrb[0].mxu0 %v519
      %v826 = vpop.f32.mrb[0].mxu0
      %v827 = vadd.f32 %v440, %v826
      %v828 = vpop.f32.mrb[0].mxu0
      %829 = vmatprep.mubr.f32.mxu0 0.0
      %830 = vmatmul.mubr.f32.gmra.mrb[0].mxu0 %v522
      %v831 = vpop.f32.mrb[0].mxu0
      %v832 = vadd.f32 %v440, %v831
      %v833 = vpop.f32.mrb[0].mxu0
      %834 = vmatprep.mubr.f32.mxu0 0.0
      %835 = vmatmul.mubr.f32.gmra.mrb[0].mxu0 %v525
      %v836 = vpop.f32.mrb[0].mxu0
      %v837 = vadd.f32 %v440, %v836
      %v838 = vpop.f32.mrb[0].mxu0
      %839 = vmatprep.mubr.f32.mxu0 0.0
      %840 = vmatmul.mubr.f32.gmra.mrb[0].mxu0 %v528
      %v841 = vpop.f32.mrb[0].mxu0
      %v842 = vadd.f32 %v440, %v841
      %v843 = vpop.f32.mrb[0].mxu0
      %844 = vmatprep.mubr.f32.mxu0 0.0
      %845 = vmatmul.mubr.f32.gmra.mrb[0].mxu0 %v531
      %v846 = vpop.f32.mrb[0].mxu0
      %v847 = vadd.f32 %v440, %v846
      %v848 = vpop.f32.mrb[0].mxu0
      %849 = vmatprep.mubr.f32.mxu0 0.0
      %850 = vmatmul.mubr.f32.gmra.mrb[0].mxu0 %v534
      %v851 = vpop.f32.mrb[0].mxu0
      %v852 = vadd.f32 %v440, %v851
      %v853 = vpop.f32.mrb[0].mxu0
      %854 = vmatprep.mubr.f32.mxu0 0.0
      %855 = vmatmul.mubr.f32.gmra.mrb[0].mxu0 %v537
      %v856 = vpop.f32.mrb[0].mxu0
      %v857 = vadd.f32 %v440, %v856
      %v858 = vpop.f32.mrb[0].mxu0
      %859 = vmatprep.mubr.f32.mxu0 0.0
      %860 = vmatmul.mubr.f32.gmra.mrb[0].mxu0 %v540
      %v861 = vpop.f32.mrb[0].mxu0
      %v862 = vadd.f32 %v440, %v861
      %v863 = vpop.f32.mrb[0].mxu0
      %864 = vmatprep.mubr.f32.mxu0 0.0
      %865 = vmatmul.mubr.f32.gmra.mrb[0].mxu0 %v543
      %v866 = vpop.f32.mrb[0].mxu0
      %v867 = vadd.f32 %v440, %v866
      %v868 = vpop.f32.mrb[0].mxu0
      %869 = vmatprep.mubr.f32.mxu0 0.0
      %870 = vmatmul.mubr.f32.gmra.mrb[0].mxu0 %v546
      %v871 = vpop.f32.mrb[0].mxu0
      %v872 = vadd.f32 %v440, %v871
      %v873 = vpop.f32.mrb[0].mxu0
      %874 = vmatprep.mubr.f32.mxu0 0.0
      %875 = vmatmul.mubr.f32.gmra.mrb[0].mxu0 %v549
      %v876 = vpop.f32.mrb[0].mxu0
      %v877 = vadd.f32 %v440, %v876
      %v878 = vpop.f32.mrb[0].mxu0
      %879 = vmatprep.mubr.f32.mxu0 0.0
      %880 = vmatmul.mubr.f32.gmra.mrb[0].mxu0 %v552
      %v881 = vpop.f32.mrb[0].mxu0
      %v882 = vadd.f32 %v440, %v881
      %v883 = vpop.f32.mrb[0].mxu0
      %884 = vmatprep.mubr.f32.mxu0 0.0
      %885 = vmatmul.mubr.f32.gmra.mrb[0].mxu0 %v555
      %v886 = vpop.f32.mrb[0].mxu0
      %v887 = vadd.f32 %v440, %v886
      %v888 = vpop.f32.mrb[0].mxu0
      %889 = vmatprep.mubr.f32.mxu0 0.0
      %890 = vmatmul.mubr.f32.gmra.mrb[0].mxu0 %v558
      %v891 = vpop.f32.mrb[0].mxu0
      %v892 = vadd.f32 %v440, %v891
      %v893 = vpop.f32.mrb[0].mxu0
      %894 = vmatprep.mubr.f32.mxu0 0.0
      %895 = vmatmul.mubr.f32.gmra.mrb[0].mxu0 %v561
      %v896 = vpop.f32.mrb[0].mxu0
      %v897 = vadd.f32 %v440, %v896
      %v898 = vpop.f32.mrb[0].mxu0
      %899 = vmatprep.mubr.f32.mxu0 0.0
      %900 = vmatmul.mubr.f32.gmra.mrb[0].mxu0 %v564
      %v901 = vpop.f32.mrb[0].mxu0
      %v902 = vadd.f32 %v440, %v901
      %v903 = vpop.f32.mrb[0].mxu0
      %904 = vmatprep.mubr.f32.mxu0 0.0
      %905 = vmatmul.mubr.f32.gmra.mrb[0].mxu0 %v567
      %v906 = vpop.f32.mrb[0].mxu0
      %v907 = vadd.f32 %v440, %v906
      %v908 = vpop.f32.mrb[0].mxu0
      %909 = vmatprep.mubr.f32.mxu0 0.0
      %910 = vmatmul.mubr.f32.gmra.mrb[0].mxu0 %v570
      %v911 = vpop.f32.mrb[0].mxu0
      %v912 = vadd.f32 %v440, %v911
      %v913 = vpop.f32.mrb[0].mxu0
      %914 = vmatprep.mubr.f32.mxu0 0.0
      %915 = vmatmul.mubr.f32.gmra.mrb[0].mxu0 %v573
      %v916 = vpop.f32.mrb[0].mxu0
      %v917 = vadd.f32 %v440, %v916
      %v918 = vpop.f32.mrb[0].mxu0
      %919 = vmatprep.mubr.f32.mxu0 0.0
      %920 = vmatmul.mubr.f32.gmra.mrb[0].mxu0 %v576
      %v921 = vpop.f32.mrb[0].mxu0
      %v922 = vadd.f32 %v440, %v921
      %v923 = vpop.f32.mrb[0].mxu0
      %924 = vmatprep.mubr.f32.mxu0 0.0
      %925 = vmatmul.mubr.f32.gmra.mrb[0].mxu0 %v579
      %v926 = vpop.f32.mrb[0].mxu0
      %v927 = vadd.f32 %v440, %v926
      %v928 = vpop.f32.mrb[0].mxu0
      %929 = vmatprep.mubr.f32.mxu0 0.0
      %930 = vmatmul.mubr.f32.gmra.mrb[0].mxu0 %v582
      %v931 = vpop.f32.mrb[0].mxu0
      %v932 = vadd.f32 %v440, %v931
      %v933 = vpop.f32.mrb[0].mxu0
      %934 = vmatprep.mubr.f32.mxu0 0.0
      %935 = vmatmul.mubr.f32.gmra.mrb[0].mxu0 %v585
      %v936 = vpop.f32.mrb[0].mxu0
      %v937 = vadd.f32 %v440, %v936
      %v938 = vpop.f32.mrb[0].mxu0
      %939 = vmatprep.mubr.f32.mxu0 0.0
      %940 = vmatmul.mubr.f32.gmra.mrb[0].mxu0 %v588
      %v941 = vpop.f32.mrb[0].mxu0
      %v942 = vadd.f32 %v440, %v941
      %v943 = vpop.f32.mrb[0].mxu0
      %944 = vmatprep.mubr.f32.mxu0 0.0
      %945 = vmatmul.mubr.f32.gmra.mrb[0].mxu0 %v591
      %v946 = vpop.f32.mrb[0].mxu0
      %v947 = vadd.f32 %v440, %v946
      %v948 = vpop.f32.mrb[0].mxu0
      %949 = vmatprep.mubr.f32.mxu0 0.0
      %950 = vmatmul.mubr.f32.gmra.mrb[0].mxu0 %v594
      %v951 = vpop.f32.mrb[0].mxu0
      %v952 = vadd.f32 %v440, %v951
      %v953 = vpop.f32.mrb[0].mxu0
      %954 = vmatprep.mubr.f32.mxu0 0.0
      %955 = vmatmul.mubr.f32.gmra.mrb[0].mxu0 %v597
      %v956 = vpop.f32.mrb[0].mxu0
      %v957 = vadd.f32 %v440, %v956
      %v958 = vpop.f32.mrb[0].mxu0
      %959 = vmatprep.mubr.f32.mxu0 0.0
      %960 = vmatmul.mubr.f32.gmra.mrb[0].mxu0 %v600
      %v961 = vpop.f32.mrb[0].mxu0
      %v962 = vadd.f32 %v440, %v961
      %v963 = vpop.f32.mrb[0].mxu0
      %964 = vmatprep.mubr.f32.mxu0 0.0
      %965 = vmatmul.mubr.f32.gmra.mrb[0].mxu0 %v603
      %v966 = vpop.f32.mrb[0].mxu0
      %v967 = vadd.f32 %v440, %v966
      %v968 = vpop.f32.mrb[0].mxu0
      %969 = vmatprep.mubr.f32.mxu0 0.0
      %970 = vmatmul.mubr.f32.gmra.mrb[0].mxu0 %v606
      %v971 = vpop.f32.mrb[0].mxu0
      %v972 = vadd.f32 %v440, %v971
      %v973 = vpop.f32.mrb[0].mxu0
      %974 = vmatprep.mubr.f32.mxu0 0.0
      %975 = vmatmul.mubr.f32.gmra.mrb[0].mxu0 %v609
      %v976 = vpop.f32.mrb[0].mxu0
      %v977 = vadd.f32 %v440, %v976
      %v978 = vpop.f32.mrb[0].mxu0
      %979 = vmatprep.mubr.f32.mxu0 0.0
      %980 = vmatmul.mubr.f32.gmra.mrb[0].mxu0 %v612
      %v981 = vpop.f32.mrb[0].mxu0
      %v982 = vadd.f32 %v440, %v981
      %v983 = vpop.f32.mrb[0].mxu0
      %984 = vmatprep.mubr.f32.mxu0 0.0
      %985 = vmatmul.mubr.f32.gmra.mrb[0].mxu0 %v615
      %v986 = vpop.f32.mrb[0].mxu0
      %v987 = vadd.f32 %v440, %v986
      %v988 = vpop.f32.mrb[0].mxu0
      %989 = vmatprep.mubr.f32.mxu0 0.0
      %990 = vmatmul.mubr.f32.gmra.mrb[0].mxu0 %v618
      %v991 = vpop.f32.mrb[0].mxu0
      %v992 = vadd.f32 %v440, %v991
      %v993 = vpop.f32.mrb[0].mxu0
      %994 = vmatprep.mubr.f32.mxu0 0.0
      %995 = vmatmul.mubr.f32.gmra.mrb[0].mxu0 %v621
      %v996 = vpop.f32.mrb[0].mxu0
      %v997 = vadd.f32 %v440, %v996
      %v998 = vpop.f32.mrb[0].mxu0
      %999 = vmatprep.mubr.f32.mxu0 0.0
      %1000 = vmatmul.mubr.f32.gmra.mrb[0].mxu0 %v624
      %v1001 = vpop.f32.mrb[0].mxu0
      %v1002 = vadd.f32 %v440, %v1001
      %v1003 = vpop.f32.mrb[0].mxu0
      %1004 = vmatprep.mubr.f32.mxu0 0.0
      %1005 = vmatmul.mubr.f32.gmra.mrb[0].mxu0 %v627
      %v1006 = vpop.f32.mrb[0].mxu0
      %v1007 = vadd.f32 %v440, %v1006
      %v1008 = vpop.f32.mrb[0].mxu0
      %1009 = vmatprep.mubr.f32.mxu0 0.0
      %1010 = vmatmul.mubr.f32.gmra.mrb[0].mxu0 %v630
      %v1011 = vpop.f32.mrb[0].mxu0
      %v1012 = vadd.f32 %v440, %v1011
      %v1013 = vpop.f32.mrb[0].mxu0
      %1014 = vmatprep.mubr.f32.mxu0 0.0
      %1015 = vmatmul.mubr.f32.gmra.mrb[0].mxu0 %v633
      %v1016 = vpop.f32.mrb[0].mxu0
      %v1017 = vadd.f32 %v440, %v1016
      %v1018 = vpop.f32.mrb[0].mxu0
      %1019 = vdwg.mxu0
      %1020 = vst [vmem:[%s349] sm:$0xff] %v702
      %1021 = vst [vmem:[%s349 + $0x8] sm:$0xff] %v707
      %1022 = vst [vmem:[%s349 + $0x10] sm:$0xff] %v712
      %1023 = vst [vmem:[%s349 + $0x18] sm:$0xff] %v717
      %1024 = vst [vmem:[%s349 + $0x20] sm:$0xff] %v722
      %1025 = vst [vmem:[%s349 + $0x28] sm:$0xff] %v727
      %1026 = vst [vmem:[%s349 + $0x30] sm:$0xff] %v732
      %1027 = vst [vmem:[%s349 + $0x38] sm:$0xff] %v737
      %1028 = vst [vmem:[%s349 + $0x40] sm:$0xff] %v742
      %1029 = vst [vmem:[%s349 + $0x48] sm:$0xff] %v747
      %1030 = vst [vmem:[%s349 + $0x50] sm:$0xff] %v752
      %1031 = vst [vmem:[%s349 + $0x58] sm:$0xff] %v757
      %1032 = vst [vmem:[%s349 + $0x60] sm:$0xff] %v762
      %1033 = vst [vmem:[%s349 + $0x68] sm:$0xff] %v767
      %1034 = vst [vmem:[%s349 + $0x70] sm:$0xff] %v772
      %1035 = vst [vmem:[%s349 + $0x78] sm:$0xff] %v777
      %1036 = vst [vmem:[%s349 + $0x80] sm:$0xff] %v782
      %1037 = vst [vmem:[%s349 + $0x88] sm:$0xff] %v787
      %1038 = vst [vmem:[%s349 + $0x90] sm:$0xff] %v792
      %1039 = vst [vmem:[%s349 + $0x98] sm:$0xff] %v797
      %1040 = vst [vmem:[%s349 + $0xa0] sm:$0xff] %v802
      %1041 = vst [vmem:[%s349 + $0xa8] sm:$0xff] %v807
      %1042 = vst [vmem:[%s349 + $0xb0] sm:$0xff] %v812
      %1043 = vst [vmem:[%s349 + $0xb8] sm:$0xff] %v817
      %1044 = vst [vmem:[%s349 + $0xc0] sm:$0xff] %v822
      %1045 = vst [vmem:[%s349 + $0xc8] sm:$0xff] %v827
      %1046 = vst [vmem:[%s349 + $0xd0] sm:$0xff] %v832
      %1047 = vst [vmem:[%s349 + $0xd8] sm:$0xff] %v837
      %1048 = vst [vmem:[%s349 + $0xe0] sm:$0xff] %v842
      %1049 = vst [vmem:[%s349 + $0xe8] sm:$0xff] %v847
      %1050 = vst [vmem:[%s349 + $0xf0] sm:$0xff] %v852
      %1051 = vst [vmem:[%s349 + $0xf8] sm:$0xff] %v857
      %1052 = vst [vmem:[%s349 + $0x100] sm:$0xff] %v862
      %1053 = vst [vmem:[%s349 + $0x108] sm:$0xff] %v867
      %1054 = vst [vmem:[%s349 + $0x110] sm:$0xff] %v872
      %1055 = vst [vmem:[%s349 + $0x118] sm:$0xff] %v877
      %1056 = vst [vmem:[%s349 + $0x120] sm:$0xff] %v882
      %1057 = vst [vmem:[%s349 + $0x128] sm:$0xff] %v887
      %1058 = vst [vmem:[%s349 + $0x130] sm:$0xff] %v892
      %1059 = vst [vmem:[%s349 + $0x138] sm:$0xff] %v897
      %1060 = vst [vmem:[%s349 + $0x140] sm:$0xff] %v902
      %1061 = vst [vmem:[%s349 + $0x148] sm:$0xff] %v907
      %1062 = vst [vmem:[%s349 + $0x150] sm:$0xff] %v912
      %1063 = vst [vmem:[%s349 + $0x158] sm:$0xff] %v917
      %1064 = vst [vmem:[%s349 + $0x160] sm:$0xff] %v922
      %1065 = vst [vmem:[%s349 + $0x168] sm:$0xff] %v927
      %1066 = vst [vmem:[%s349 + $0x170] sm:$0xff] %v932
      %1067 = vst [vmem:[%s349 + $0x178] sm:$0xff] %v937
      %1068 = vst [vmem:[%s349 + $0x180] sm:$0xff] %v942
      %1069 = vst [vmem:[%s349 + $0x188] sm:$0xff] %v947
      %1070 = vst [vmem:[%s349 + $0x190] sm:$0xff] %v952
      %1071 = vst [vmem:[%s349 + $0x198] sm:$0xff] %v957
      %1072 = vst [vmem:[%s349 + $0x1a0] sm:$0xff] %v962
      %1073 = vst [vmem:[%s349 + $0x1a8] sm:$0xff] %v967
      %1074 = vst [vmem:[%s349 + $0x1b0] sm:$0xff] %v972
      %1075 = vst [vmem:[%s349 + $0x1b8] sm:$0xff] %v977
      %1076 = vst [vmem:[%s349 + $0x1c0] sm:$0xff] %v982
      %1077 = vst [vmem:[%s349 + $0x1c8] sm:$0xff] %v987
      %1078 = vst [vmem:[%s349 + $0x1d0] sm:$0xff] %v992
      %1079 = vst [vmem:[%s349 + $0x1d8] sm:$0xff] %v997
      %1080 = vst [vmem:[%s349 + $0x1e0] sm:$0xff] %v1002
      %1081 = vst [vmem:[%s349 + $0x1e8] sm:$0xff] %v1007
      %1082 = vst [vmem:[%s349 + $0x1f0] sm:$0xff] %v1012
      %1083 = vst [vmem:[%s349 + $0x1f8] sm:$0xff] %v1017
      %v1084 = vmax.f32 %v702, 0.0
      %v1085 = vmax.f32 %v707, 0.0
      %v1086 = vmax.f32 %v712, 0.0
      %v1087 = vmax.f32 %v717, 0.0
      %v1088 = vmax.f32 %v722, 0.0
      %v1089 = vmax.f32 %v727, 0.0
      %v1090 = vmax.f32 %v732, 0.0
      %v1091 = vmax.f32 %v737, 0.0
      %v1092 = vmax.f32 %v742, 0.0
      %v1093 = vmax.f32 %v747, 0.0
      %v1094 = vmax.f32 %v752, 0.0
      %v1095 = vmax.f32 %v757, 0.0
      %v1096 = vmax.f32 %v762, 0.0
      %v1097 = vmax.f32 %v767, 0.0
      %v1098 = vmax.f32 %v772, 0.0
      %v1099 = vmax.f32 %v777, 0.0
      %v1100 = vmax.f32 %v782, 0.0
      %v1101 = vmax.f32 %v787, 0.0
      %v1102 = vmax.f32 %v792, 0.0
      %v1103 = vmax.f32 %v797, 0.0
      %v1104 = vmax.f32 %v802, 0.0
      %v1105 = vmax.f32 %v807, 0.0
      %v1106 = vmax.f32 %v812, 0.0
      %v1107 = vmax.f32 %v817, 0.0
      %v1108 = vmax.f32 %v822, 0.0
      %v1109 = vmax.f32 %v827, 0.0
      %v1110 = vmax.f32 %v832, 0.0
      %v1111 = vmax.f32 %v837, 0.0
      %v1112 = vmax.f32 %v842, 0.0
      %v1113 = vmax.f32 %v847, 0.0
      %v1114 = vmax.f32 %v852, 0.0
      %v1115 = vmax.f32 %v857, 0.0
      %v1116 = vmax.f32 %v862, 0.0
      %v1117 = vmax.f32 %v867, 0.0
      %v1118 = vmax.f32 %v872, 0.0
      %v1119 = vmax.f32 %v877, 0.0
      %v1120 = vmax.f32 %v882, 0.0
      %v1121 = vmax.f32 %v887, 0.0
      %v1122 = vmax.f32 %v892, 0.0
      %v1123 = vmax.f32 %v897, 0.0
      %v1124 = vmax.f32 %v902, 0.0
      %v1125 = vmax.f32 %v907, 0.0
      %v1126 = vmax.f32 %v912, 0.0
      %v1127 = vmax.f32 %v917, 0.0
      %v1128 = vmax.f32 %v922, 0.0
      %v1129 = vmax.f32 %v927, 0.0
      %v1130 = vmax.f32 %v932, 0.0
      %v1131 = vmax.f32 %v937, 0.0
      %v1132 = vmax.f32 %v942, 0.0
      %v1133 = vmax.f32 %v947, 0.0
      %v1134 = vmax.f32 %v952, 0.0
      %v1135 = vmax.f32 %v957, 0.0
      %v1136 = vmax.f32 %v962, 0.0
      %v1137 = vmax.f32 %v967, 0.0
      %v1138 = vmax.f32 %v972, 0.0
      %v1139 = vmax.f32 %v977, 0.0
      %v1140 = vmax.f32 %v982, 0.0
      %v1141 = vmax.f32 %v987, 0.0
      %v1142 = vmax.f32 %v992, 0.0
      %v1143 = vmax.f32 %v997, 0.0
      %v1144 = vmax.f32 %v1002, 0.0
      %v1145 = vmax.f32 %v1007, 0.0
      %v1146 = vmax.f32 %v1012, 0.0
      %v1147 = vmax.f32 %v1017, 0.0
      %v1148 = vld [vmem:[%s2] sm:$0xff]
      %v1149 = vld [vmem:[%s2 + $0x8] sm:$0xff]
      %v1150 = vld [vmem:[%s2 + $0x10] sm:$0xff]
      %v1151 = vld [vmem:[%s2 + $0x18] sm:$0xff]
      %v1152 = vld [vmem:[%s5] sm:$0x1]
      %v1154 = vlaneseq
      %v1155 = vshrl.u32 %v1154, 7
      %v1156 = vsub.s32 0, %v1155
      %v1157 = vrot.slane %v1152, %v1156
      %vm1159 = vcmask 261120
      %v1161 = vsel %vm1159, %v1084, 0
      %v1164 = vsel %vm1159, %v1085, 0
      %v1167 = vsel %vm1159, %v1086, 0
      %v1170 = vsel %vm1159, %v1087, 0
      %v1173 = vsel %vm1159, %v1088, 0
      %v1176 = vsel %vm1159, %v1089, 0
      %v1179 = vsel %vm1159, %v1090, 0
      %v1182 = vsel %vm1159, %v1091, 0
      %v1185 = vsel %vm1159, %v1092, 0
      %v1188 = vsel %vm1159, %v1093, 0
      %v1191 = vsel %vm1159, %v1094, 0
      %v1194 = vsel %vm1159, %v1095, 0
      %v1197 = vsel %vm1159, %v1096, 0
      %v1200 = vsel %vm1159, %v1097, 0
      %v1203 = vsel %vm1159, %v1098, 0
      %v1206 = vsel %vm1159, %v1099, 0
      %v1209 = vsel %vm1159, %v1100, 0
      %v1212 = vsel %vm1159, %v1101, 0
      %v1215 = vsel %vm1159, %v1102, 0
      %v1218 = vsel %vm1159, %v1103, 0
      %v1221 = vsel %vm1159, %v1104, 0
      %v1224 = vsel %vm1159, %v1105, 0
      %v1227 = vsel %vm1159, %v1106, 0
      %v1230 = vsel %vm1159, %v1107, 0
      %v1233 = vsel %vm1159, %v1108, 0
      %v1236 = vsel %vm1159, %v1109, 0
      %v1239 = vsel %vm1159, %v1110, 0
      %v1242 = vsel %vm1159, %v1111, 0
      %v1245 = vsel %vm1159, %v1112, 0
      %v1248 = vsel %vm1159, %v1113, 0
      %v1251 = vsel %vm1159, %v1114, 0
      %v1254 = vsel %vm1159, %v1115, 0
      %v1257 = vsel %vm1159, %v1116, 0
      %v1260 = vsel %vm1159, %v1117, 0
      %v1263 = vsel %vm1159, %v1118, 0
      %v1266 = vsel %vm1159, %v1119, 0
      %v1269 = vsel %vm1159, %v1120, 0
      %v1272 = vsel %vm1159, %v1121, 0
      %v1275 = vsel %vm1159, %v1122, 0
      %v1278 = vsel %vm1159, %v1123, 0
      %v1281 = vsel %vm1159, %v1124, 0
      %v1284 = vsel %vm1159, %v1125, 0
      %v1287 = vsel %vm1159, %v1126, 0
      %v1290 = vsel %vm1159, %v1127, 0
      %v1293 = vsel %vm1159, %v1128, 0
      %v1296 = vsel %vm1159, %v1129, 0
      %v1299 = vsel %vm1159, %v1130, 0
      %v1302 = vsel %vm1159, %v1131, 0
      %v1305 = vsel %vm1159, %v1132, 0
      %v1308 = vsel %vm1159, %v1133, 0
      %v1311 = vsel %vm1159, %v1134, 0
      %v1314 = vsel %vm1159, %v1135, 0
      %v1317 = vsel %vm1159, %v1136, 0
      %v1320 = vsel %vm1159, %v1137, 0
      %v1323 = vsel %vm1159, %v1138, 0
      %v1326 = vsel %vm1159, %v1139, 0
      %v1329 = vsel %vm1159, %v1140, 0
      %v1332 = vsel %vm1159, %v1141, 0
      %v1335 = vsel %vm1159, %v1142, 0
      %v1338 = vsel %vm1159, %v1143, 0
      %v1341 = vsel %vm1159, %v1144, 0
      %v1344 = vsel %vm1159, %v1145, 0
      %v1347 = vsel %vm1159, %v1146, 0
      %v1350 = vsel %vm1159, %v1147, 0
      %1352 = vmatprep.subr.mxu0 0.0
      %1353 = vmatpush1.msra.mxu0 %v1148
      %1354 = vmatprep.subr.mxu0 0.0
      %1355 = vmatpush1.msra.mxu0 %v1149
      %1356 = vmatprep.subr.mxu0 0.0
      %1357 = vmatpush1.msra.mxu0 %v1150
      %1358 = vmatprep.subr.mxu0 0.0
      %1359 = vmatpush1.msra.mxu0 %v1151
      %1360 = vmatprep.subr.mxu0 0.0
      %1361 = vmatpush1.msra.mxu0 0.0
      %1362 = vmatprep.subr.mxu0 0.0
      %1363 = vmatpush1.msra.mxu0 0.0
      %1364 = vmatprep.subr.mxu0 0.0
      %1365 = vmatpush1.msra.mxu0 0.0
      %1366 = vmatprep.subr.mxu0 0.0
      %1367 = vmatpush1.msra.mxu0 0.0
      %1368 = vmatprep.subr.mxu0 0.0
      %1369 = vmatpush1.msra.mxu0 0.0
      %1370 = vmatprep.subr.mxu0 0.0
      %1371 = vmatpush1.msra.mxu0 0.0
      %1372 = vmatprep.subr.mxu0 0.0
      %1373 = vmatpush1.msra.mxu0 0.0
      %1374 = vmatprep.subr.mxu0 0.0
      %1375 = vmatpush1.msra.mxu0 0.0
      %1376 = vmatprep.subr.mxu0 0.0
      %1377 = vmatpush1.msra.mxu0 0.0
      %1378 = vmatprep.subr.mxu0 0.0
      %1379 = vmatpush1.msra.mxu0 0.0
      %1380 = vmatprep.subr.mxu0 0.0
      %1381 = vmatpush1.msra.mxu0 0.0
      %1382 = vmatprep.subr.mxu0 0.0
      %1383 = vmatpush1.msra.mxu0 0.0
      %1384 = vmatprep.subr.mxu0 0.0
      %1385 = vmatpush1.msra.mxu0 0.0
      %1386 = vmatprep.subr.mxu0 0.0
      %1387 = vmatpush1.msra.mxu0 0.0
      %1388 = vmatprep.subr.mxu0 0.0
      %1389 = vmatpush1.msra.mxu0 0.0
      %1390 = vmatprep.subr.mxu0 0.0
      %1391 = vmatpush1.msra.mxu0 0.0
      %1392 = vmatprep.subr.mxu0 0.0
      %1393 = vmatpush1.msra.mxu0 0.0
      %1394 = vmatprep.subr.mxu0 0.0
      %1395 = vmatpush1.msra.mxu0 0.0
      %1396 = vmatprep.subr.mxu0 0.0
      %1397 = vmatpush1.msra.mxu0 0.0
      %1398 = vmatprep.subr.mxu0 0.0
      %1399 = vmatpush1.msra.mxu0 0.0
      %1400 = vmatprep.subr.mxu0 0.0
      %1401 = vmatpush1.msra.mxu0 0.0
      %1402 = vmatprep.subr.mxu0 0.0
      %1403 = vmatpush1.msra.mxu0 0.0
      %1404 = vmatprep.subr.mxu0 0.0
      %1405 = vmatpush1.msra.mxu0 0.0
      %1406 = vmatprep.subr.mxu0 0.0
      %1407 = vmatpush1.msra.mxu0 0.0
      %1408 = vmatprep.subr.mxu0 0.0
      %1409 = vmatpush1.msra.mxu0 0.0
      %1410 = vmatprep.subr.mxu0 0.0
      %1411 = vmatpush1.msra.mxu0 0.0
      %1412 = vmatprep.subr.mxu0 0.0
      %1413 = vmatpush1.msra.mxu0 0.0
      %1414 = vmatprep.subr.mxu0 0.0
      %1415 = vmatpush1.msra.mxu0 0.0
      %1416 = vmatprep.mubr.f32.mxu0 0.0
      %1417 = vmatmul.mubr.f32.gmra.mrb[0].mxu0 %v1161
      %v1418 = vpop.f32.mrb[0].mxu0
      %v1419 = vadd.f32 %v1157, %v1418
      %v1420 = vpop.f32.mrb[0].mxu0
      %1421 = vmatprep.mubr.f32.mxu0 0.0
      %1422 = vmatmul.mubr.f32.gmra.mrb[0].mxu0 %v1164
      %v1423 = vpop.f32.mrb[0].mxu0
      %v1424 = vadd.f32 %v1157, %v1423
      %v1425 = vpop.f32.mrb[0].mxu0
      %1426 = vmatprep.mubr.f32.mxu0 0.0
      %1427 = vmatmul.mubr.f32.gmra.mrb[0].mxu0 %v1167
      %v1428 = vpop.f32.mrb[0].mxu0
      %v1429 = vadd.f32 %v1157, %v1428
      %v1430 = vpop.f32.mrb[0].mxu0
      %1431 = vmatprep.mubr.f32.mxu0 0.0
      %1432 = vmatmul.mubr.f32.gmra.mrb[0].mxu0 %v1170
      %v1433 = vpop.f32.mrb[0].mxu0
      %v1434 = vadd.f32 %v1157, %v1433
      %v1435 = vpop.f32.mrb[0].mxu0
      %1436 = vmatprep.mubr.f32.mxu0 0.0
      %1437 = vmatmul.mubr.f32.gmra.mrb[0].mxu0 %v1173
      %v1438 = vpop.f32.mrb[0].mxu0
      %v1439 = vadd.f32 %v1157, %v1438
      %v1440 = vpop.f32.mrb[0].mxu0
      %1441 = vmatprep.mubr.f32.mxu0 0.0
      %1442 = vmatmul.mubr.f32.gmra.mrb[0].mxu0 %v1176
      %v1443 = vpop.f32.mrb[0].mxu0
      %v1444 = vadd.f32 %v1157, %v1443
      %v1445 = vpop.f32.mrb[0].mxu0
      %1446 = vmatprep.mubr.f32.mxu0 0.0
      %1447 = vmatmul.mubr.f32.gmra.mrb[0].mxu0 %v1179
      %v1448 = vpop.f32.mrb[0].mxu0
      %v1449 = vadd.f32 %v1157, %v1448
      %v1450 = vpop.f32.mrb[0].mxu0
      %1451 = vmatprep.mubr.f32.mxu0 0.0
      %1452 = vmatmul.mubr.f32.gmra.mrb[0].mxu0 %v1182
      %v1453 = vpop.f32.mrb[0].mxu0
      %v1454 = vadd.f32 %v1157, %v1453
      %v1455 = vpop.f32.mrb[0].mxu0
      %1456 = vmatprep.mubr.f32.mxu0 0.0
      %1457 = vmatmul.mubr.f32.gmra.mrb[0].mxu0 %v1185
      %v1458 = vpop.f32.mrb[0].mxu0
      %v1459 = vadd.f32 %v1157, %v1458
      %v1460 = vpop.f32.mrb[0].mxu0
      %1461 = vmatprep.mubr.f32.mxu0 0.0
      %1462 = vmatmul.mubr.f32.gmra.mrb[0].mxu0 %v1188
      %v1463 = vpop.f32.mrb[0].mxu0
      %v1464 = vadd.f32 %v1157, %v1463
      %v1465 = vpop.f32.mrb[0].mxu0
      %1466 = vmatprep.mubr.f32.mxu0 0.0
      %1467 = vmatmul.mubr.f32.gmra.mrb[0].mxu0 %v1191
      %v1468 = vpop.f32.mrb[0].mxu0
      %v1469 = vadd.f32 %v1157, %v1468
      %v1470 = vpop.f32.mrb[0].mxu0
      %1471 = vmatprep.mubr.f32.mxu0 0.0
      %1472 = vmatmul.mubr.f32.gmra.mrb[0].mxu0 %v1194
      %v1473 = vpop.f32.mrb[0].mxu0
      %v1474 = vadd.f32 %v1157, %v1473
      %v1475 = vpop.f32.mrb[0].mxu0
      %1476 = vmatprep.mubr.f32.mxu0 0.0
      %1477 = vmatmul.mubr.f32.gmra.mrb[0].mxu0 %v1197
      %v1478 = vpop.f32.mrb[0].mxu0
      %v1479 = vadd.f32 %v1157, %v1478
      %v1480 = vpop.f32.mrb[0].mxu0
      %1481 = vmatprep.mubr.f32.mxu0 0.0
      %1482 = vmatmul.mubr.f32.gmra.mrb[0].mxu0 %v1200
      %v1483 = vpop.f32.mrb[0].mxu0
      %v1484 = vadd.f32 %v1157, %v1483
      %v1485 = vpop.f32.mrb[0].mxu0
      %1486 = vmatprep.mubr.f32.mxu0 0.0
      %1487 = vmatmul.mubr.f32.gmra.mrb[0].mxu0 %v1203
      %v1488 = vpop.f32.mrb[0].mxu0
      %v1489 = vadd.f32 %v1157, %v1488
      %v1490 = vpop.f32.mrb[0].mxu0
      %1491 = vmatprep.mubr.f32.mxu0 0.0
      %1492 = vmatmul.mubr.f32.gmra.mrb[0].mxu0 %v1206
      %v1493 = vpop.f32.mrb[0].mxu0
      %v1494 = vadd.f32 %v1157, %v1493
      %v1495 = vpop.f32.mrb[0].mxu0
      %1496 = vmatprep.mubr.f32.mxu0 0.0
      %1497 = vmatmul.mubr.f32.gmra.mrb[0].mxu0 %v1209
      %v1498 = vpop.f32.mrb[0].mxu0
      %v1499 = vadd.f32 %v1157, %v1498
      %v1500 = vpop.f32.mrb[0].mxu0
      %1501 = vmatprep.mubr.f32.mxu0 0.0
      %1502 = vmatmul.mubr.f32.gmra.mrb[0].mxu0 %v1212
      %v1503 = vpop.f32.mrb[0].mxu0
      %v1504 = vadd.f32 %v1157, %v1503
      %v1505 = vpop.f32.mrb[0].mxu0
      %1506 = vmatprep.mubr.f32.mxu0 0.0
      %1507 = vmatmul.mubr.f32.gmra.mrb[0].mxu0 %v1215
      %v1508 = vpop.f32.mrb[0].mxu0
      %v1509 = vadd.f32 %v1157, %v1508
      %v1510 = vpop.f32.mrb[0].mxu0
      %1511 = vmatprep.mubr.f32.mxu0 0.0
      %1512 = vmatmul.mubr.f32.gmra.mrb[0].mxu0 %v1218
      %v1513 = vpop.f32.mrb[0].mxu0
      %v1514 = vadd.f32 %v1157, %v1513
      %v1515 = vpop.f32.mrb[0].mxu0
      %1516 = vmatprep.mubr.f32.mxu0 0.0
      %1517 = vmatmul.mubr.f32.gmra.mrb[0].mxu0 %v1221
      %v1518 = vpop.f32.mrb[0].mxu0
      %v1519 = vadd.f32 %v1157, %v1518
      %v1520 = vpop.f32.mrb[0].mxu0
      %1521 = vmatprep.mubr.f32.mxu0 0.0
      %1522 = vmatmul.mubr.f32.gmra.mrb[0].mxu0 %v1224
      %v1523 = vpop.f32.mrb[0].mxu0
      %v1524 = vadd.f32 %v1157, %v1523
      %v1525 = vpop.f32.mrb[0].mxu0
      %1526 = vmatprep.mubr.f32.mxu0 0.0
      %1527 = vmatmul.mubr.f32.gmra.mrb[0].mxu0 %v1227
      %v1528 = vpop.f32.mrb[0].mxu0
      %v1529 = vadd.f32 %v1157, %v1528
      %v1530 = vpop.f32.mrb[0].mxu0
      %1531 = vmatprep.mubr.f32.mxu0 0.0
      %1532 = vmatmul.mubr.f32.gmra.mrb[0].mxu0 %v1230
      %v1533 = vpop.f32.mrb[0].mxu0
      %v1534 = vadd.f32 %v1157, %v1533
      %v1535 = vpop.f32.mrb[0].mxu0
      %1536 = vmatprep.mubr.f32.mxu0 0.0
      %1537 = vmatmul.mubr.f32.gmra.mrb[0].mxu0 %v1233
      %v1538 = vpop.f32.mrb[0].mxu0
      %v1539 = vadd.f32 %v1157, %v1538
      %v1540 = vpop.f32.mrb[0].mxu0
      %1541 = vmatprep.mubr.f32.mxu0 0.0
      %1542 = vmatmul.mubr.f32.gmra.mrb[0].mxu0 %v1236
      %v1543 = vpop.f32.mrb[0].mxu0
      %v1544 = vadd.f32 %v1157, %v1543
      %v1545 = vpop.f32.mrb[0].mxu0
      %1546 = vmatprep.mubr.f32.mxu0 0.0
      %1547 = vmatmul.mubr.f32.gmra.mrb[0].mxu0 %v1239
      %v1548 = vpop.f32.mrb[0].mxu0
      %v1549 = vadd.f32 %v1157, %v1548
      %v1550 = vpop.f32.mrb[0].mxu0
      %1551 = vmatprep.mubr.f32.mxu0 0.0
      %1552 = vmatmul.mubr.f32.gmra.mrb[0].mxu0 %v1242
      %v1553 = vpop.f32.mrb[0].mxu0
      %v1554 = vadd.f32 %v1157, %v1553
      %v1555 = vpop.f32.mrb[0].mxu0
      %1556 = vmatprep.mubr.f32.mxu0 0.0
      %1557 = vmatmul.mubr.f32.gmra.mrb[0].mxu0 %v1245
      %v1558 = vpop.f32.mrb[0].mxu0
      %v1559 = vadd.f32 %v1157, %v1558
      %v1560 = vpop.f32.mrb[0].mxu0
      %1561 = vmatprep.mubr.f32.mxu0 0.0
      %1562 = vmatmul.mubr.f32.gmra.mrb[0].mxu0 %v1248
      %v1563 = vpop.f32.mrb[0].mxu0
      %v1564 = vadd.f32 %v1157, %v1563
      %v1565 = vpop.f32.mrb[0].mxu0
      %1566 = vmatprep.mubr.f32.mxu0 0.0
      %1567 = vmatmul.mubr.f32.gmra.mrb[0].mxu0 %v1251
      %v1568 = vpop.f32.mrb[0].mxu0
      %v1569 = vadd.f32 %v1157, %v1568
      %v1570 = vpop.f32.mrb[0].mxu0
      %1571 = vmatprep.mubr.f32.mxu0 0.0
      %1572 = vmatmul.mubr.f32.gmra.mrb[0].mxu0 %v1254
      %v1573 = vpop.f32.mrb[0].mxu0
      %v1574 = vadd.f32 %v1157, %v1573
      %v1575 = vpop.f32.mrb[0].mxu0
      %1576 = vmatprep.mubr.f32.mxu0 0.0
      %1577 = vmatmul.mubr.f32.gmra.mrb[0].mxu0 %v1257
      %v1578 = vpop.f32.mrb[0].mxu0
      %v1579 = vadd.f32 %v1157, %v1578
      %v1580 = vpop.f32.mrb[0].mxu0
      %1581 = vmatprep.mubr.f32.mxu0 0.0
      %1582 = vmatmul.mubr.f32.gmra.mrb[0].mxu0 %v1260
      %v1583 = vpop.f32.mrb[0].mxu0
      %v1584 = vadd.f32 %v1157, %v1583
      %v1585 = vpop.f32.mrb[0].mxu0
      %1586 = vmatprep.mubr.f32.mxu0 0.0
      %1587 = vmatmul.mubr.f32.gmra.mrb[0].mxu0 %v1263
      %v1588 = vpop.f32.mrb[0].mxu0
      %v1589 = vadd.f32 %v1157, %v1588
      %v1590 = vpop.f32.mrb[0].mxu0
      %1591 = vmatprep.mubr.f32.mxu0 0.0
      %1592 = vmatmul.mubr.f32.gmra.mrb[0].mxu0 %v1266
      %v1593 = vpop.f32.mrb[0].mxu0
      %v1594 = vadd.f32 %v1157, %v1593
      %v1595 = vpop.f32.mrb[0].mxu0
      %1596 = vmatprep.mubr.f32.mxu0 0.0
      %1597 = vmatmul.mubr.f32.gmra.mrb[0].mxu0 %v1269
      %v1598 = vpop.f32.mrb[0].mxu0
      %v1599 = vadd.f32 %v1157, %v1598
      %v1600 = vpop.f32.mrb[0].mxu0
      %1601 = vmatprep.mubr.f32.mxu0 0.0
      %1602 = vmatmul.mubr.f32.gmra.mrb[0].mxu0 %v1272
      %v1603 = vpop.f32.mrb[0].mxu0
      %v1604 = vadd.f32 %v1157, %v1603
      %v1605 = vpop.f32.mrb[0].mxu0
      %1606 = vmatprep.mubr.f32.mxu0 0.0
      %1607 = vmatmul.mubr.f32.gmra.mrb[0].mxu0 %v1275
      %v1608 = vpop.f32.mrb[0].mxu0
      %v1609 = vadd.f32 %v1157, %v1608
      %v1610 = vpop.f32.mrb[0].mxu0
      %1611 = vmatprep.mubr.f32.mxu0 0.0
      %1612 = vmatmul.mubr.f32.gmra.mrb[0].mxu0 %v1278
      %v1613 = vpop.f32.mrb[0].mxu0
      %v1614 = vadd.f32 %v1157, %v1613
      %v1615 = vpop.f32.mrb[0].mxu0
      %1616 = vmatprep.mubr.f32.mxu0 0.0
      %1617 = vmatmul.mubr.f32.gmra.mrb[0].mxu0 %v1281
      %v1618 = vpop.f32.mrb[0].mxu0
      %v1619 = vadd.f32 %v1157, %v1618
      %v1620 = vpop.f32.mrb[0].mxu0
      %1621 = vmatprep.mubr.f32.mxu0 0.0
      %1622 = vmatmul.mubr.f32.gmra.mrb[0].mxu0 %v1284
      %v1623 = vpop.f32.mrb[0].mxu0
      %v1624 = vadd.f32 %v1157, %v1623
      %v1625 = vpop.f32.mrb[0].mxu0
      %1626 = vmatprep.mubr.f32.mxu0 0.0
      %1627 = vmatmul.mubr.f32.gmra.mrb[0].mxu0 %v1287
      %v1628 = vpop.f32.mrb[0].mxu0
      %v1629 = vadd.f32 %v1157, %v1628
      %v1630 = vpop.f32.mrb[0].mxu0
      %1631 = vmatprep.mubr.f32.mxu0 0.0
      %1632 = vmatmul.mubr.f32.gmra.mrb[0].mxu0 %v1290
      %v1633 = vpop.f32.mrb[0].mxu0
      %v1634 = vadd.f32 %v1157, %v1633
      %v1635 = vpop.f32.mrb[0].mxu0
      %1636 = vmatprep.mubr.f32.mxu0 0.0
      %1637 = vmatmul.mubr.f32.gmra.mrb[0].mxu0 %v1293
      %v1638 = vpop.f32.mrb[0].mxu0
      %v1639 = vadd.f32 %v1157, %v1638
      %v1640 = vpop.f32.mrb[0].mxu0
      %1641 = vmatprep.mubr.f32.mxu0 0.0
      %1642 = vmatmul.mubr.f32.gmra.mrb[0].mxu0 %v1296
      %v1643 = vpop.f32.mrb[0].mxu0
      %v1644 = vadd.f32 %v1157, %v1643
      %v1645 = vpop.f32.mrb[0].mxu0
      %1646 = vmatprep.mubr.f32.mxu0 0.0
      %1647 = vmatmul.mubr.f32.gmra.mrb[0].mxu0 %v1299
      %v1648 = vpop.f32.mrb[0].mxu0
      %v1649 = vadd.f32 %v1157, %v1648
      %v1650 = vpop.f32.mrb[0].mxu0
      %1651 = vmatprep.mubr.f32.mxu0 0.0
      %1652 = vmatmul.mubr.f32.gmra.mrb[0].mxu0 %v1302
      %v1653 = vpop.f32.mrb[0].mxu0
      %v1654 = vadd.f32 %v1157, %v1653
      %v1655 = vpop.f32.mrb[0].mxu0
      %1656 = vmatprep.mubr.f32.mxu0 0.0
      %1657 = vmatmul.mubr.f32.gmra.mrb[0].mxu0 %v1305
      %v1658 = vpop.f32.mrb[0].mxu0
      %v1659 = vadd.f32 %v1157, %v1658
      %v1660 = vpop.f32.mrb[0].mxu0
      %1661 = vmatprep.mubr.f32.mxu0 0.0
      %1662 = vmatmul.mubr.f32.gmra.mrb[0].mxu0 %v1308
      %v1663 = vpop.f32.mrb[0].mxu0
      %v1664 = vadd.f32 %v1157, %v1663
      %v1665 = vpop.f32.mrb[0].mxu0
      %1666 = vmatprep.mubr.f32.mxu0 0.0
      %1667 = vmatmul.mubr.f32.gmra.mrb[0].mxu0 %v1311
      %v1668 = vpop.f32.mrb[0].mxu0
      %v1669 = vadd.f32 %v1157, %v1668
      %v1670 = vpop.f32.mrb[0].mxu0
      %1671 = vmatprep.mubr.f32.mxu0 0.0
      %1672 = vmatmul.mubr.f32.gmra.mrb[0].mxu0 %v1314
      %v1673 = vpop.f32.mrb[0].mxu0
      %v1674 = vadd.f32 %v1157, %v1673
      %v1675 = vpop.f32.mrb[0].mxu0
      %1676 = vmatprep.mubr.f32.mxu0 0.0
      %1677 = vmatmul.mubr.f32.gmra.mrb[0].mxu0 %v1317
      %v1678 = vpop.f32.mrb[0].mxu0
      %v1679 = vadd.f32 %v1157, %v1678
      %v1680 = vpop.f32.mrb[0].mxu0
      %1681 = vmatprep.mubr.f32.mxu0 0.0
      %1682 = vmatmul.mubr.f32.gmra.mrb[0].mxu0 %v1320
      %v1683 = vpop.f32.mrb[0].mxu0
      %v1684 = vadd.f32 %v1157, %v1683
      %v1685 = vpop.f32.mrb[0].mxu0
      %1686 = vmatprep.mubr.f32.mxu0 0.0
      %1687 = vmatmul.mubr.f32.gmra.mrb[0].mxu0 %v1323
      %v1688 = vpop.f32.mrb[0].mxu0
      %v1689 = vadd.f32 %v1157, %v1688
      %v1690 = vpop.f32.mrb[0].mxu0
      %1691 = vmatprep.mubr.f32.mxu0 0.0
      %1692 = vmatmul.mubr.f32.gmra.mrb[0].mxu0 %v1326
      %v1693 = vpop.f32.mrb[0].mxu0
      %v1694 = vadd.f32 %v1157, %v1693
      %v1695 = vpop.f32.mrb[0].mxu0
      %1696 = vmatprep.mubr.f32.mxu0 0.0
      %1697 = vmatmul.mubr.f32.gmra.mrb[0].mxu0 %v1329
      %v1698 = vpop.f32.mrb[0].mxu0
      %v1699 = vadd.f32 %v1157, %v1698
      %v1700 = vpop.f32.mrb[0].mxu0
      %1701 = vmatprep.mubr.f32.mxu0 0.0
      %1702 = vmatmul.mubr.f32.gmra.mrb[0].mxu0 %v1332
      %v1703 = vpop.f32.mrb[0].mxu0
      %v1704 = vadd.f32 %v1157, %v1703
      %v1705 = vpop.f32.mrb[0].mxu0
      %1706 = vmatprep.mubr.f32.mxu0 0.0
      %1707 = vmatmul.mubr.f32.gmra.mrb[0].mxu0 %v1335
      %v1708 = vpop.f32.mrb[0].mxu0
      %v1709 = vadd.f32 %v1157, %v1708
      %v1710 = vpop.f32.mrb[0].mxu0
      %1711 = vmatprep.mubr.f32.mxu0 0.0
      %1712 = vmatmul.mubr.f32.gmra.mrb[0].mxu0 %v1338
      %v1713 = vpop.f32.mrb[0].mxu0
      %v1714 = vadd.f32 %v1157, %v1713
      %v1715 = vpop.f32.mrb[0].mxu0
      %1716 = vmatprep.mubr.f32.mxu0 0.0
      %1717 = vmatmul.mubr.f32.gmra.mrb[0].mxu0 %v1341
      %v1718 = vpop.f32.mrb[0].mxu0
      %v1719 = vadd.f32 %v1157, %v1718
      %v1720 = vpop.f32.mrb[0].mxu0
      %1721 = vmatprep.mubr.f32.mxu0 0.0
      %1722 = vmatmul.mubr.f32.gmra.mrb[0].mxu0 %v1344
      %v1723 = vpop.f32.mrb[0].mxu0
      %v1724 = vadd.f32 %v1157, %v1723
      %v1725 = vpop.f32.mrb[0].mxu0
      %1726 = vmatprep.mubr.f32.mxu0 0.0
      %1727 = vmatmul.mubr.f32.gmra.mrb[0].mxu0 %v1347
      %v1728 = vpop.f32.mrb[0].mxu0
      %v1729 = vadd.f32 %v1157, %v1728
      %v1730 = vpop.f32.mrb[0].mxu0
      %1731 = vmatprep.mubr.f32.mxu0 0.0
      %1732 = vmatmul.mubr.f32.gmra.mrb[0].mxu0 %v1350
      %v1733 = vpop.f32.mrb[0].mxu0
      %v1734 = vadd.f32 %v1157, %v1733
      %v1735 = vpop.f32.mrb[0].mxu0
      %1736 = vdwg.mxu0
      %1737 = vst [vmem:[%s355] sm:$0xff] %v1419
      %1738 = vst [vmem:[%s355 + $0x8] sm:$0xff] %v1424
      %1739 = vst [vmem:[%s355 + $0x10] sm:$0xff] %v1429
      %1740 = vst [vmem:[%s355 + $0x18] sm:$0xff] %v1434
      %1741 = vst [vmem:[%s355 + $0x20] sm:$0xff] %v1439
      %1742 = vst [vmem:[%s355 + $0x28] sm:$0xff] %v1444
      %1743 = vst [vmem:[%s355 + $0x30] sm:$0xff] %v1449
      %1744 = vst [vmem:[%s355 + $0x38] sm:$0xff] %v1454
      %1745 = vst [vmem:[%s355 + $0x40] sm:$0xff] %v1459
      %1746 = vst [vmem:[%s355 + $0x48] sm:$0xff] %v1464
      %1747 = vst [vmem:[%s355 + $0x50] sm:$0xff] %v1469
      %1748 = vst [vmem:[%s355 + $0x58] sm:$0xff] %v1474
      %1749 = vst [vmem:[%s355 + $0x60] sm:$0xff] %v1479
      %1750 = vst [vmem:[%s355 + $0x68] sm:$0xff] %v1484
      %1751 = vst [vmem:[%s355 + $0x70] sm:$0xff] %v1489
      %1752 = vst [vmem:[%s355 + $0x78] sm:$0xff] %v1494
      %1753 = vst [vmem:[%s355 + $0x80] sm:$0xff] %v1499
      %1754 = vst [vmem:[%s355 + $0x88] sm:$0xff] %v1504
      %1755 = vst [vmem:[%s355 + $0x90] sm:$0xff] %v1509
      %1756 = vst [vmem:[%s355 + $0x98] sm:$0xff] %v1514
      %1757 = vst [vmem:[%s355 + $0xa0] sm:$0xff] %v1519
      %1758 = vst [vmem:[%s355 + $0xa8] sm:$0xff] %v1524
      %1759 = vst [vmem:[%s355 + $0xb0] sm:$0xff] %v1529
      %1760 = vst [vmem:[%s355 + $0xb8] sm:$0xff] %v1534
      %1761 = vst [vmem:[%s355 + $0xc0] sm:$0xff] %v1539
      %1762 = vst [vmem:[%s355 + $0xc8] sm:$0xff] %v1544
      %1763 = vst [vmem:[%s355 + $0xd0] sm:$0xff] %v1549
      %1764 = vst [vmem:[%s355 + $0xd8] sm:$0xff] %v1554
      %1765 = vst [vmem:[%s355 + $0xe0] sm:$0xff] %v1559
      %1766 = vst [vmem:[%s355 + $0xe8] sm:$0xff] %v1564
      %1767 = vst [vmem:[%s355 + $0xf0] sm:$0xff] %v1569
      %1768 = vst [vmem:[%s355 + $0xf8] sm:$0xff] %v1574
      %1769 = vst [vmem:[%s355 + $0x100] sm:$0xff] %v1579
      %1770 = vst [vmem:[%s355 + $0x108] sm:$0xff] %v1584
      %1771 = vst [vmem:[%s355 + $0x110] sm:$0xff] %v1589
      %1772 = vst [vmem:[%s355 + $0x118] sm:$0xff] %v1594
      %1773 = vst [vmem:[%s355 + $0x120] sm:$0xff] %v1599
      %1774 = vst [vmem:[%s355 + $0x128] sm:$0xff] %v1604
      %1775 = vst [vmem:[%s355 + $0x130] sm:$0xff] %v1609
      %1776 = vst [vmem:[%s355 + $0x138] sm:$0xff] %v1614
      %1777 = vst [vmem:[%s355 + $0x140] sm:$0xff] %v1619
      %1778 = vst [vmem:[%s355 + $0x148] sm:$0xff] %v1624
      %1779 = vst [vmem:[%s355 + $0x150] sm:$0xff] %v1629
      %1780 = vst [vmem:[%s355 + $0x158] sm:$0xff] %v1634
      %1781 = vst [vmem:[%s355 + $0x160] sm:$0xff] %v1639
      %1782 = vst [vmem:[%s355 + $0x168] sm:$0xff] %v1644
      %1783 = vst [vmem:[%s355 + $0x170] sm:$0xff] %v1649
      %1784 = vst [vmem:[%s355 + $0x178] sm:$0xff] %v1654
      %1785 = vst [vmem:[%s355 + $0x180] sm:$0xff] %v1659
      %1786 = vst [vmem:[%s355 + $0x188] sm:$0xff] %v1664
      %1787 = vst [vmem:[%s355 + $0x190] sm:$0xff] %v1669
      %1788 = vst [vmem:[%s355 + $0x198] sm:$0xff] %v1674
      %1789 = vst [vmem:[%s355 + $0x1a0] sm:$0xff] %v1679
      %1790 = vst [vmem:[%s355 + $0x1a8] sm:$0xff] %v1684
      %1791 = vst [vmem:[%s355 + $0x1b0] sm:$0xff] %v1689
      %1792 = vst [vmem:[%s355 + $0x1b8] sm:$0xff] %v1694
      %1793 = vst [vmem:[%s355 + $0x1c0] sm:$0xff] %v1699
      %1794 = vst [vmem:[%s355 + $0x1c8] sm:$0xff] %v1704
      %1795 = vst [vmem:[%s355 + $0x1d0] sm:$0xff] %v1709
      %1796 = vst [vmem:[%s355 + $0x1d8] sm:$0xff] %v1714
      %1797 = vst [vmem:[%s355 + $0x1e0] sm:$0xff] %v1719
      %1798 = vst [vmem:[%s355 + $0x1e8] sm:$0xff] %v1724
      %1799 = vst [vmem:[%s355 + $0x1f0] sm:$0xff] %v1729
      %1800 = vst [vmem:[%s355 + $0x1f8] sm:$0xff] %v1734
      %v1801 = vmax.f32 %v1419, 0.0
      %v1802 = vmax.f32 %v1424, 0.0
      %v1803 = vmax.f32 %v1429, 0.0
      %v1804 = vmax.f32 %v1434, 0.0
      %v1805 = vmax.f32 %v1439, 0.0
      %v1806 = vmax.f32 %v1444, 0.0
      %v1807 = vmax.f32 %v1449, 0.0
      %v1808 = vmax.f32 %v1454, 0.0
      %v1809 = vmax.f32 %v1459, 0.0
      %v1810 = vmax.f32 %v1464, 0.0
      %v1811 = vmax.f32 %v1469, 0.0
      %v1812 = vmax.f32 %v1474, 0.0
      %v1813 = vmax.f32 %v1479, 0.0
      %v1814 = vmax.f32 %v1484, 0.0
      %v1815 = vmax.f32 %v1489, 0.0
      %v1816 = vmax.f32 %v1494, 0.0
      %v1817 = vmax.f32 %v1499, 0.0
      %v1818 = vmax.f32 %v1504, 0.0
      %v1819 = vmax.f32 %v1509, 0.0
      %v1820 = vmax.f32 %v1514, 0.0
      %v1821 = vmax.f32 %v1519, 0.0
      %v1822 = vmax.f32 %v1524, 0.0
      %v1823 = vmax.f32 %v1529, 0.0
      %v1824 = vmax.f32 %v1534, 0.0
      %v1825 = vmax.f32 %v1539, 0.0
      %v1826 = vmax.f32 %v1544, 0.0
      %v1827 = vmax.f32 %v1549, 0.0
      %v1828 = vmax.f32 %v1554, 0.0
      %v1829 = vmax.f32 %v1559, 0.0
      %v1830 = vmax.f32 %v1564, 0.0
      %v1831 = vmax.f32 %v1569, 0.0
      %v1832 = vmax.f32 %v1574, 0.0
      %v1833 = vmax.f32 %v1579, 0.0
      %v1834 = vmax.f32 %v1584, 0.0
      %v1835 = vmax.f32 %v1589, 0.0
      %v1836 = vmax.f32 %v1594, 0.0
      %v1837 = vmax.f32 %v1599, 0.0
      %v1838 = vmax.f32 %v1604, 0.0
      %v1839 = vmax.f32 %v1609, 0.0
      %v1840 = vmax.f32 %v1614, 0.0
      %v1841 = vmax.f32 %v1619, 0.0
      %v1842 = vmax.f32 %v1624, 0.0
      %v1843 = vmax.f32 %v1629, 0.0
      %v1844 = vmax.f32 %v1634, 0.0
      %v1845 = vmax.f32 %v1639, 0.0
      %v1846 = vmax.f32 %v1644, 0.0
      %v1847 = vmax.f32 %v1649, 0.0
      %v1848 = vmax.f32 %v1654, 0.0
      %v1849 = vmax.f32 %v1659, 0.0
      %v1850 = vmax.f32 %v1664, 0.0
      %v1851 = vmax.f32 %v1669, 0.0
      %v1852 = vmax.f32 %v1674, 0.0
      %v1853 = vmax.f32 %v1679, 0.0
      %v1854 = vmax.f32 %v1684, 0.0
      %v1855 = vmax.f32 %v1689, 0.0
      %v1856 = vmax.f32 %v1694, 0.0
      %v1857 = vmax.f32 %v1699, 0.0
      %v1858 = vmax.f32 %v1704, 0.0
      %v1859 = vmax.f32 %v1709, 0.0
      %v1860 = vmax.f32 %v1714, 0.0
      %v1861 = vmax.f32 %v1719, 0.0
      %v1862 = vmax.f32 %v1724, 0.0
      %v1863 = vmax.f32 %v1729, 0.0
      %v1864 = vmax.f32 %v1734, 0.0
      %v1865 = vld [vmem:[%s3] sm:$0xff]
      %v1866 = vld [vmem:[%s3 + $0x8] sm:$0xff]
      %v1867 = vld [vmem:[%s3 + $0x10] sm:$0xff]
      %v1868 = vld [vmem:[%s3 + $0x18] sm:$0xff]
      %v1869 = vld [vmem:[%s6] sm:$0x1]
      %v1871 = vlaneseq
      %v1872 = vshrl.u32 %v1871, 7
      %v1873 = vsub.s32 0, %v1872
      %v1874 = vrot.slane %v1869, %v1873
      %v1877 = vsel %vm1159, %v1801, 0
      %v1880 = vsel %vm1159, %v1802, 0
      %v1883 = vsel %vm1159, %v1803, 0
      %v1886 = vsel %vm1159, %v1804, 0
      %v1889 = vsel %vm1159, %v1805, 0
      %v1892 = vsel %vm1159, %v1806, 0
      %v1895 = vsel %vm1159, %v1807, 0
      %v1898 = vsel %vm1159, %v1808, 0
      %v1901 = vsel %vm1159, %v1809, 0
      %v1904 = vsel %vm1159, %v1810, 0
      %v1907 = vsel %vm1159, %v1811, 0
      %v1910 = vsel %vm1159, %v1812, 0
      %v1913 = vsel %vm1159, %v1813, 0
      %v1916 = vsel %vm1159, %v1814, 0
      %v1919 = vsel %vm1159, %v1815, 0
      %v1922 = vsel %vm1159, %v1816, 0
      %v1925 = vsel %vm1159, %v1817, 0
      %v1928 = vsel %vm1159, %v1818, 0
      %v1931 = vsel %vm1159, %v1819, 0
      %v1934 = vsel %vm1159, %v1820, 0
      %v1937 = vsel %vm1159, %v1821, 0
      %v1940 = vsel %vm1159, %v1822, 0
      %v1943 = vsel %vm1159, %v1823, 0
      %v1946 = vsel %vm1159, %v1824, 0
      %v1949 = vsel %vm1159, %v1825, 0
      %v1952 = vsel %vm1159, %v1826, 0
      %v1955 = vsel %vm1159, %v1827, 0
      %v1958 = vsel %vm1159, %v1828, 0
      %v1961 = vsel %vm1159, %v1829, 0
      %v1964 = vsel %vm1159, %v1830, 0
      %v1967 = vsel %vm1159, %v1831, 0
      %v1970 = vsel %vm1159, %v1832, 0
      %v1973 = vsel %vm1159, %v1833, 0
      %v1976 = vsel %vm1159, %v1834, 0
      %v1979 = vsel %vm1159, %v1835, 0
      %v1982 = vsel %vm1159, %v1836, 0
      %v1985 = vsel %vm1159, %v1837, 0
      %v1988 = vsel %vm1159, %v1838, 0
      %v1991 = vsel %vm1159, %v1839, 0
      %v1994 = vsel %vm1159, %v1840, 0
      %v1997 = vsel %vm1159, %v1841, 0
      %v2000 = vsel %vm1159, %v1842, 0
      %v2003 = vsel %vm1159, %v1843, 0
      %v2006 = vsel %vm1159, %v1844, 0
      %v2009 = vsel %vm1159, %v1845, 0
      %v2012 = vsel %vm1159, %v1846, 0
      %v2015 = vsel %vm1159, %v1847, 0
      %v2018 = vsel %vm1159, %v1848, 0
      %v2021 = vsel %vm1159, %v1849, 0
      %v2024 = vsel %vm1159, %v1850, 0
      %v2027 = vsel %vm1159, %v1851, 0
      %v2030 = vsel %vm1159, %v1852, 0
      %v2033 = vsel %vm1159, %v1853, 0
      %v2036 = vsel %vm1159, %v1854, 0
      %v2039 = vsel %vm1159, %v1855, 0
      %v2042 = vsel %vm1159, %v1856, 0
      %v2045 = vsel %vm1159, %v1857, 0
      %v2048 = vsel %vm1159, %v1858, 0
      %v2051 = vsel %vm1159, %v1859, 0
      %v2054 = vsel %vm1159, %v1860, 0
      %v2057 = vsel %vm1159, %v1861, 0
      %v2060 = vsel %vm1159, %v1862, 0
      %v2063 = vsel %vm1159, %v1863, 0
      %v2066 = vsel %vm1159, %v1864, 0
      %2068 = vmatprep.subr.mxu0 0.0
      %2069 = vmatpush1.msra.mxu0 %v1865
      %2070 = vmatprep.subr.mxu0 0.0
      %2071 = vmatpush1.msra.mxu0 %v1866
      %2072 = vmatprep.subr.mxu0 0.0
      %2073 = vmatpush1.msra.mxu0 %v1867
      %2074 = vmatprep.subr.mxu0 0.0
      %2075 = vmatpush1.msra.mxu0 %v1868
      %2076 = vmatprep.subr.mxu0 0.0
      %2077 = vmatpush1.msra.mxu0 0.0
      %2078 = vmatprep.subr.mxu0 0.0
      %2079 = vmatpush1.msra.mxu0 0.0
      %2080 = vmatprep.subr.mxu0 0.0
      %2081 = vmatpush1.msra.mxu0 0.0
      %2082 = vmatprep.subr.mxu0 0.0
      %2083 = vmatpush1.msra.mxu0 0.0
      %2084 = vmatprep.subr.mxu0 0.0
      %2085 = vmatpush1.msra.mxu0 0.0
      %2086 = vmatprep.subr.mxu0 0.0
      %2087 = vmatpush1.msra.mxu0 0.0
      %2088 = vmatprep.subr.mxu0 0.0
      %2089 = vmatpush1.msra.mxu0 0.0
      %2090 = vmatprep.subr.mxu0 0.0
      %2091 = vmatpush1.msra.mxu0 0.0
      %2092 = vmatprep.subr.mxu0 0.0
      %2093 = vmatpush1.msra.mxu0 0.0
      %2094 = vmatprep.subr.mxu0 0.0
      %2095 = vmatpush1.msra.mxu0 0.0
      %2096 = vmatprep.subr.mxu0 0.0
      %2097 = vmatpush1.msra.mxu0 0.0
      %2098 = vmatprep.subr.mxu0 0.0
      %2099 = vmatpush1.msra.mxu0 0.0
      %2100 = vmatprep.subr.mxu0 0.0
      %2101 = vmatpush1.msra.mxu0 0.0
      %2102 = vmatprep.subr.mxu0 0.0
      %2103 = vmatpush1.msra.mxu0 0.0
      %2104 = vmatprep.subr.mxu0 0.0
      %2105 = vmatpush1.msra.mxu0 0.0
      %2106 = vmatprep.subr.mxu0 0.0
      %2107 = vmatpush1.msra.mxu0 0.0
      %2108 = vmatprep.subr.mxu0 0.0
      %2109 = vmatpush1.msra.mxu0 0.0
      %2110 = vmatprep.subr.mxu0 0.0
      %2111 = vmatpush1.msra.mxu0 0.0
      %2112 = vmatprep.subr.mxu0 0.0
      %2113 = vmatpush1.msra.mxu0 0.0
      %2114 = vmatprep.subr.mxu0 0.0
      %2115 = vmatpush1.msra.mxu0 0.0
      %2116 = vmatprep.subr.mxu0 0.0
      %2117 = vmatpush1.msra.mxu0 0.0
      %2118 = vmatprep.subr.mxu0 0.0
      %2119 = vmatpush1.msra.mxu0 0.0
      %2120 = vmatprep.subr.mxu0 0.0
      %2121 = vmatpush1.msra.mxu0 0.0
      %2122 = vmatprep.subr.mxu0 0.0
      %2123 = vmatpush1.msra.mxu0 0.0
      %2124 = vmatprep.subr.mxu0 0.0
      %2125 = vmatpush1.msra.mxu0 0.0
      %2126 = vmatprep.subr.mxu0 0.0
      %2127 = vmatpush1.msra.mxu0 0.0
      %2128 = vmatprep.subr.mxu0 0.0
      %2129 = vmatpush1.msra.mxu0 0.0
      %2130 = vmatprep.subr.mxu0 0.0
      %2131 = vmatpush1.msra.mxu0 0.0
      %2132 = vmatprep.mubr.f32.mxu0 0.0
      %2133 = vmatmul.mubr.f32.gmra.mrb[0].mxu0 %v1877
      %v2134 = vpop.f32.mrb[0].mxu0
      %v2135 = vadd.f32 %v1874, %v2134
      %v2136 = vpop.f32.mrb[0].mxu0
      %2137 = vmatprep.mubr.f32.mxu0 0.0
      %2138 = vmatmul.mubr.f32.gmra.mrb[0].mxu0 %v1880
      %v2139 = vpop.f32.mrb[0].mxu0
      %v2140 = vadd.f32 %v1874, %v2139
      %v2141 = vpop.f32.mrb[0].mxu0
      %2142 = vmatprep.mubr.f32.mxu0 0.0
      %2143 = vmatmul.mubr.f32.gmra.mrb[0].mxu0 %v1883
      %v2144 = vpop.f32.mrb[0].mxu0
      %v2145 = vadd.f32 %v1874, %v2144
      %v2146 = vpop.f32.mrb[0].mxu0
      %2147 = vmatprep.mubr.f32.mxu0 0.0
      %2148 = vmatmul.mubr.f32.gmra.mrb[0].mxu0 %v1886
      %v2149 = vpop.f32.mrb[0].mxu0
      %v2150 = vadd.f32 %v1874, %v2149
      %v2151 = vpop.f32.mrb[0].mxu0
      %2152 = vmatprep.mubr.f32.mxu0 0.0
      %2153 = vmatmul.mubr.f32.gmra.mrb[0].mxu0 %v1889
      %v2154 = vpop.f32.mrb[0].mxu0
      %v2155 = vadd.f32 %v1874, %v2154
      %v2156 = vpop.f32.mrb[0].mxu0
      %2157 = vmatprep.mubr.f32.mxu0 0.0
      %2158 = vmatmul.mubr.f32.gmra.mrb[0].mxu0 %v1892
      %v2159 = vpop.f32.mrb[0].mxu0
      %v2160 = vadd.f32 %v1874, %v2159
      %v2161 = vpop.f32.mrb[0].mxu0
      %2162 = vmatprep.mubr.f32.mxu0 0.0
      %2163 = vmatmul.mubr.f32.gmra.mrb[0].mxu0 %v1895
      %v2164 = vpop.f32.mrb[0].mxu0
      %v2165 = vadd.f32 %v1874, %v2164
      %v2166 = vpop.f32.mrb[0].mxu0
      %2167 = vmatprep.mubr.f32.mxu0 0.0
      %2168 = vmatmul.mubr.f32.gmra.mrb[0].mxu0 %v1898
      %v2169 = vpop.f32.mrb[0].mxu0
      %v2170 = vadd.f32 %v1874, %v2169
      %v2171 = vpop.f32.mrb[0].mxu0
      %2172 = vmatprep.mubr.f32.mxu0 0.0
      %2173 = vmatmul.mubr.f32.gmra.mrb[0].mxu0 %v1901
      %v2174 = vpop.f32.mrb[0].mxu0
      %v2175 = vadd.f32 %v1874, %v2174
      %v2176 = vpop.f32.mrb[0].mxu0
      %2177 = vmatprep.mubr.f32.mxu0 0.0
      %2178 = vmatmul.mubr.f32.gmra.mrb[0].mxu0 %v1904
      %v2179 = vpop.f32.mrb[0].mxu0
      %v2180 = vadd.f32 %v1874, %v2179
      %v2181 = vpop.f32.mrb[0].mxu0
      %2182 = vmatprep.mubr.f32.mxu0 0.0
      %2183 = vmatmul.mubr.f32.gmra.mrb[0].mxu0 %v1907
      %v2184 = vpop.f32.mrb[0].mxu0
      %v2185 = vadd.f32 %v1874, %v2184
      %v2186 = vpop.f32.mrb[0].mxu0
      %2187 = vmatprep.mubr.f32.mxu0 0.0
      %2188 = vmatmul.mubr.f32.gmra.mrb[0].mxu0 %v1910
      %v2189 = vpop.f32.mrb[0].mxu0
      %v2190 = vadd.f32 %v1874, %v2189
      %v2191 = vpop.f32.mrb[0].mxu0
      %2192 = vmatprep.mubr.f32.mxu0 0.0
      %2193 = vmatmul.mubr.f32.gmra.mrb[0].mxu0 %v1913
      %v2194 = vpop.f32.mrb[0].mxu0
      %v2195 = vadd.f32 %v1874, %v2194
      %v2196 = vpop.f32.mrb[0].mxu0
      %2197 = vmatprep.mubr.f32.mxu0 0.0
      %2198 = vmatmul.mubr.f32.gmra.mrb[0].mxu0 %v1916
      %v2199 = vpop.f32.mrb[0].mxu0
      %v2200 = vadd.f32 %v1874, %v2199
      %v2201 = vpop.f32.mrb[0].mxu0
      %2202 = vmatprep.mubr.f32.mxu0 0.0
      %2203 = vmatmul.mubr.f32.gmra.mrb[0].mxu0 %v1919
      %v2204 = vpop.f32.mrb[0].mxu0
      %v2205 = vadd.f32 %v1874, %v2204
      %v2206 = vpop.f32.mrb[0].mxu0
      %2207 = vmatprep.mubr.f32.mxu0 0.0
      %2208 = vmatmul.mubr.f32.gmra.mrb[0].mxu0 %v1922
      %v2209 = vpop.f32.mrb[0].mxu0
      %v2210 = vadd.f32 %v1874, %v2209
      %v2211 = vpop.f32.mrb[0].mxu0
      %2212 = vmatprep.mubr.f32.mxu0 0.0
      %2213 = vmatmul.mubr.f32.gmra.mrb[0].mxu0 %v1925
      %v2214 = vpop.f32.mrb[0].mxu0
      %v2215 = vadd.f32 %v1874, %v2214
      %v2216 = vpop.f32.mrb[0].mxu0
      %2217 = vmatprep.mubr.f32.mxu0 0.0
      %2218 = vmatmul.mubr.f32.gmra.mrb[0].mxu0 %v1928
      %v2219 = vpop.f32.mrb[0].mxu0
      %v2220 = vadd.f32 %v1874, %v2219
      %v2221 = vpop.f32.mrb[0].mxu0
      %2222 = vmatprep.mubr.f32.mxu0 0.0
      %2223 = vmatmul.mubr.f32.gmra.mrb[0].mxu0 %v1931
      %v2224 = vpop.f32.mrb[0].mxu0
      %v2225 = vadd.f32 %v1874, %v2224
      %v2226 = vpop.f32.mrb[0].mxu0
      %2227 = vmatprep.mubr.f32.mxu0 0.0
      %2228 = vmatmul.mubr.f32.gmra.mrb[0].mxu0 %v1934
      %v2229 = vpop.f32.mrb[0].mxu0
      %v2230 = vadd.f32 %v1874, %v2229
      %v2231 = vpop.f32.mrb[0].mxu0
      %2232 = vmatprep.mubr.f32.mxu0 0.0
      %2233 = vmatmul.mubr.f32.gmra.mrb[0].mxu0 %v1937
      %v2234 = vpop.f32.mrb[0].mxu0
      %v2235 = vadd.f32 %v1874, %v2234
      %v2236 = vpop.f32.mrb[0].mxu0
      %2237 = vmatprep.mubr.f32.mxu0 0.0
      %2238 = vmatmul.mubr.f32.gmra.mrb[0].mxu0 %v1940
      %v2239 = vpop.f32.mrb[0].mxu0
      %v2240 = vadd.f32 %v1874, %v2239
      %v2241 = vpop.f32.mrb[0].mxu0
      %2242 = vmatprep.mubr.f32.mxu0 0.0
      %2243 = vmatmul.mubr.f32.gmra.mrb[0].mxu0 %v1943
      %v2244 = vpop.f32.mrb[0].mxu0
      %v2245 = vadd.f32 %v1874, %v2244
      %v2246 = vpop.f32.mrb[0].mxu0
      %2247 = vmatprep.mubr.f32.mxu0 0.0
      %2248 = vmatmul.mubr.f32.gmra.mrb[0].mxu0 %v1946
      %v2249 = vpop.f32.mrb[0].mxu0
      %v2250 = vadd.f32 %v1874, %v2249
      %v2251 = vpop.f32.mrb[0].mxu0
      %2252 = vmatprep.mubr.f32.mxu0 0.0
      %2253 = vmatmul.mubr.f32.gmra.mrb[0].mxu0 %v1949
      %v2254 = vpop.f32.mrb[0].mxu0
      %v2255 = vadd.f32 %v1874, %v2254
      %v2256 = vpop.f32.mrb[0].mxu0
      %2257 = vmatprep.mubr.f32.mxu0 0.0
      %2258 = vmatmul.mubr.f32.gmra.mrb[0].mxu0 %v1952
      %v2259 = vpop.f32.mrb[0].mxu0
      %v2260 = vadd.f32 %v1874, %v2259
      %v2261 = vpop.f32.mrb[0].mxu0
      %2262 = vmatprep.mubr.f32.mxu0 0.0
      %2263 = vmatmul.mubr.f32.gmra.mrb[0].mxu0 %v1955
      %v2264 = vpop.f32.mrb[0].mxu0
      %v2265 = vadd.f32 %v1874, %v2264
      %v2266 = vpop.f32.mrb[0].mxu0
      %2267 = vmatprep.mubr.f32.mxu0 0.0
      %2268 = vmatmul.mubr.f32.gmra.mrb[0].mxu0 %v1958
      %v2269 = vpop.f32.mrb[0].mxu0
      %v2270 = vadd.f32 %v1874, %v2269
      %v2271 = vpop.f32.mrb[0].mxu0
      %2272 = vmatprep.mubr.f32.mxu0 0.0
      %2273 = vmatmul.mubr.f32.gmra.mrb[0].mxu0 %v1961
      %v2274 = vpop.f32.mrb[0].mxu0
      %v2275 = vadd.f32 %v1874, %v2274
      %v2276 = vpop.f32.mrb[0].mxu0
      %2277 = vmatprep.mubr.f32.mxu0 0.0
      %2278 = vmatmul.mubr.f32.gmra.mrb[0].mxu0 %v1964
      %v2279 = vpop.f32.mrb[0].mxu0
      %v2280 = vadd.f32 %v1874, %v2279
      %v2281 = vpop.f32.mrb[0].mxu0
      %2282 = vmatprep.mubr.f32.mxu0 0.0
      %2283 = vmatmul.mubr.f32.gmra.mrb[0].mxu0 %v1967
      %v2284 = vpop.f32.mrb[0].mxu0
      %v2285 = vadd.f32 %v1874, %v2284
      %v2286 = vpop.f32.mrb[0].mxu0
      %2287 = vmatprep.mubr.f32.mxu0 0.0
      %2288 = vmatmul.mubr.f32.gmra.mrb[0].mxu0 %v1970
      %v2289 = vpop.f32.mrb[0].mxu0
      %v2290 = vadd.f32 %v1874, %v2289
      %v2291 = vpop.f32.mrb[0].mxu0
      %2292 = vmatprep.mubr.f32.mxu0 0.0
      %2293 = vmatmul.mubr.f32.gmra.mrb[0].mxu0 %v1973
      %v2294 = vpop.f32.mrb[0].mxu0
      %v2295 = vadd.f32 %v1874, %v2294
      %v2296 = vpop.f32.mrb[0].mxu0
      %2297 = vmatprep.mubr.f32.mxu0 0.0
      %2298 = vmatmul.mubr.f32.gmra.mrb[0].mxu0 %v1976
      %v2299 = vpop.f32.mrb[0].mxu0
      %v2300 = vadd.f32 %v1874, %v2299
      %v2301 = vpop.f32.mrb[0].mxu0
      %2302 = vmatprep.mubr.f32.mxu0 0.0
      %2303 = vmatmul.mubr.f32.gmra.mrb[0].mxu0 %v1979
      %v2304 = vpop.f32.mrb[0].mxu0
      %v2305 = vadd.f32 %v1874, %v2304
      %v2306 = vpop.f32.mrb[0].mxu0
      %2307 = vmatprep.mubr.f32.mxu0 0.0
      %2308 = vmatmul.mubr.f32.gmra.mrb[0].mxu0 %v1982
      %v2309 = vpop.f32.mrb[0].mxu0
      %v2310 = vadd.f32 %v1874, %v2309
      %v2311 = vpop.f32.mrb[0].mxu0
      %2312 = vmatprep.mubr.f32.mxu0 0.0
      %2313 = vmatmul.mubr.f32.gmra.mrb[0].mxu0 %v1985
      %v2314 = vpop.f32.mrb[0].mxu0
      %v2315 = vadd.f32 %v1874, %v2314
      %v2316 = vpop.f32.mrb[0].mxu0
      %2317 = vmatprep.mubr.f32.mxu0 0.0
      %2318 = vmatmul.mubr.f32.gmra.mrb[0].mxu0 %v1988
      %v2319 = vpop.f32.mrb[0].mxu0
      %v2320 = vadd.f32 %v1874, %v2319
      %v2321 = vpop.f32.mrb[0].mxu0
      %2322 = vmatprep.mubr.f32.mxu0 0.0
      %2323 = vmatmul.mubr.f32.gmra.mrb[0].mxu0 %v1991
      %v2324 = vpop.f32.mrb[0].mxu0
      %v2325 = vadd.f32 %v1874, %v2324
      %v2326 = vpop.f32.mrb[0].mxu0
      %2327 = vmatprep.mubr.f32.mxu0 0.0
      %2328 = vmatmul.mubr.f32.gmra.mrb[0].mxu0 %v1994
      %v2329 = vpop.f32.mrb[0].mxu0
      %v2330 = vadd.f32 %v1874, %v2329
      %v2331 = vpop.f32.mrb[0].mxu0
      %2332 = vmatprep.mubr.f32.mxu0 0.0
      %2333 = vmatmul.mubr.f32.gmra.mrb[0].mxu0 %v1997
      %v2334 = vpop.f32.mrb[0].mxu0
      %v2335 = vadd.f32 %v1874, %v2334
      %v2336 = vpop.f32.mrb[0].mxu0
      %2337 = vmatprep.mubr.f32.mxu0 0.0
      %2338 = vmatmul.mubr.f32.gmra.mrb[0].mxu0 %v2000
      %v2339 = vpop.f32.mrb[0].mxu0
      %v2340 = vadd.f32 %v1874, %v2339
      %v2341 = vpop.f32.mrb[0].mxu0
      %2342 = vmatprep.mubr.f32.mxu0 0.0
      %2343 = vmatmul.mubr.f32.gmra.mrb[0].mxu0 %v2003
      %v2344 = vpop.f32.mrb[0].mxu0
      %v2345 = vadd.f32 %v1874, %v2344
      %v2346 = vpop.f32.mrb[0].mxu0
      %2347 = vmatprep.mubr.f32.mxu0 0.0
      %2348 = vmatmul.mubr.f32.gmra.mrb[0].mxu0 %v2006
      %v2349 = vpop.f32.mrb[0].mxu0
      %v2350 = vadd.f32 %v1874, %v2349
      %v2351 = vpop.f32.mrb[0].mxu0
      %2352 = vmatprep.mubr.f32.mxu0 0.0
      %2353 = vmatmul.mubr.f32.gmra.mrb[0].mxu0 %v2009
      %v2354 = vpop.f32.mrb[0].mxu0
      %v2355 = vadd.f32 %v1874, %v2354
      %v2356 = vpop.f32.mrb[0].mxu0
      %2357 = vmatprep.mubr.f32.mxu0 0.0
      %2358 = vmatmul.mubr.f32.gmra.mrb[0].mxu0 %v2012
      %v2359 = vpop.f32.mrb[0].mxu0
      %v2360 = vadd.f32 %v1874, %v2359
      %v2361 = vpop.f32.mrb[0].mxu0
      %2362 = vmatprep.mubr.f32.mxu0 0.0
      %2363 = vmatmul.mubr.f32.gmra.mrb[0].mxu0 %v2015
      %v2364 = vpop.f32.mrb[0].mxu0
      %v2365 = vadd.f32 %v1874, %v2364
      %v2366 = vpop.f32.mrb[0].mxu0
      %2367 = vmatprep.mubr.f32.mxu0 0.0
      %2368 = vmatmul.mubr.f32.gmra.mrb[0].mxu0 %v2018
      %v2369 = vpop.f32.mrb[0].mxu0
      %v2370 = vadd.f32 %v1874, %v2369
      %v2371 = vpop.f32.mrb[0].mxu0
      %2372 = vmatprep.mubr.f32.mxu0 0.0
      %2373 = vmatmul.mubr.f32.gmra.mrb[0].mxu0 %v2021
      %v2374 = vpop.f32.mrb[0].mxu0
      %v2375 = vadd.f32 %v1874, %v2374
      %v2376 = vpop.f32.mrb[0].mxu0
      %2377 = vmatprep.mubr.f32.mxu0 0.0
      %2378 = vmatmul.mubr.f32.gmra.mrb[0].mxu0 %v2024
      %v2379 = vpop.f32.mrb[0].mxu0
      %v2380 = vadd.f32 %v1874, %v2379
      %v2381 = vpop.f32.mrb[0].mxu0
      %2382 = vmatprep.mubr.f32.mxu0 0.0
      %2383 = vmatmul.mubr.f32.gmra.mrb[0].mxu0 %v2027
      %v2384 = vpop.f32.mrb[0].mxu0
      %v2385 = vadd.f32 %v1874, %v2384
      %v2386 = vpop.f32.mrb[0].mxu0
      %2387 = vmatprep.mubr.f32.mxu0 0.0
      %2388 = vmatmul.mubr.f32.gmra.mrb[0].mxu0 %v2030
      %v2389 = vpop.f32.mrb[0].mxu0
      %v2390 = vadd.f32 %v1874, %v2389
      %v2391 = vpop.f32.mrb[0].mxu0
      %2392 = vmatprep.mubr.f32.mxu0 0.0
      %2393 = vmatmul.mubr.f32.gmra.mrb[0].mxu0 %v2033
      %v2394 = vpop.f32.mrb[0].mxu0
      %v2395 = vadd.f32 %v1874, %v2394
      %v2396 = vpop.f32.mrb[0].mxu0
      %2397 = vmatprep.mubr.f32.mxu0 0.0
      %2398 = vmatmul.mubr.f32.gmra.mrb[0].mxu0 %v2036
      %v2399 = vpop.f32.mrb[0].mxu0
      %v2400 = vadd.f32 %v1874, %v2399
      %v2401 = vpop.f32.mrb[0].mxu0
      %2402 = vmatprep.mubr.f32.mxu0 0.0
      %2403 = vmatmul.mubr.f32.gmra.mrb[0].mxu0 %v2039
      %v2404 = vpop.f32.mrb[0].mxu0
      %v2405 = vadd.f32 %v1874, %v2404
      %v2406 = vpop.f32.mrb[0].mxu0
      %2407 = vmatprep.mubr.f32.mxu0 0.0
      %2408 = vmatmul.mubr.f32.gmra.mrb[0].mxu0 %v2042
      %v2409 = vpop.f32.mrb[0].mxu0
      %v2410 = vadd.f32 %v1874, %v2409
      %v2411 = vpop.f32.mrb[0].mxu0
      %2412 = vmatprep.mubr.f32.mxu0 0.0
      %2413 = vmatmul.mubr.f32.gmra.mrb[0].mxu0 %v2045
      %v2414 = vpop.f32.mrb[0].mxu0
      %v2415 = vadd.f32 %v1874, %v2414
      %v2416 = vpop.f32.mrb[0].mxu0
      %2417 = vmatprep.mubr.f32.mxu0 0.0
      %2418 = vmatmul.mubr.f32.gmra.mrb[0].mxu0 %v2048
      %v2419 = vpop.f32.mrb[0].mxu0
      %v2420 = vadd.f32 %v1874, %v2419
      %v2421 = vpop.f32.mrb[0].mxu0
      %2422 = vmatprep.mubr.f32.mxu0 0.0
      %2423 = vmatmul.mubr.f32.gmra.mrb[0].mxu0 %v2051
      %v2424 = vpop.f32.mrb[0].mxu0
      %v2425 = vadd.f32 %v1874, %v2424
      %v2426 = vpop.f32.mrb[0].mxu0
      %2427 = vmatprep.mubr.f32.mxu0 0.0
      %2428 = vmatmul.mubr.f32.gmra.mrb[0].mxu0 %v2054
      %v2429 = vpop.f32.mrb[0].mxu0
      %v2430 = vadd.f32 %v1874, %v2429
      %v2431 = vpop.f32.mrb[0].mxu0
      %2432 = vmatprep.mubr.f32.mxu0 0.0
      %2433 = vmatmul.mubr.f32.gmra.mrb[0].mxu0 %v2057
      %v2434 = vpop.f32.mrb[0].mxu0
      %v2435 = vadd.f32 %v1874, %v2434
      %v2436 = vpop.f32.mrb[0].mxu0
      %2437 = vmatprep.mubr.f32.mxu0 0.0
      %2438 = vmatmul.mubr.f32.gmra.mrb[0].mxu0 %v2060
      %v2439 = vpop.f32.mrb[0].mxu0
      %v2440 = vadd.f32 %v1874, %v2439
      %v2441 = vpop.f32.mrb[0].mxu0
      %2442 = vmatprep.mubr.f32.mxu0 0.0
      %2443 = vmatmul.mubr.f32.gmra.mrb[0].mxu0 %v2063
      %v2444 = vpop.f32.mrb[0].mxu0
      %v2445 = vadd.f32 %v1874, %v2444
      %v2446 = vpop.f32.mrb[0].mxu0
      %2447 = vmatprep.mubr.f32.mxu0 0.0
      %2448 = vmatmul.mubr.f32.gmra.mrb[0].mxu0 %v2066
      %v2449 = vpop.f32.mrb[0].mxu0
      %v2450 = vadd.f32 %v1874, %v2449
      %v2451 = vpop.f32.mrb[0].mxu0
      %2452 = vdwg.mxu0
      %2453 = vst [vmem:[%s361] sm:$0xff] %v2135
      %2454 = vst [vmem:[%s361 + $0x8] sm:$0xff] %v2140
      %2455 = vst [vmem:[%s361 + $0x10] sm:$0xff] %v2145
      %2456 = vst [vmem:[%s361 + $0x18] sm:$0xff] %v2150
      %2457 = vst [vmem:[%s361 + $0x20] sm:$0xff] %v2155
      %2458 = vst [vmem:[%s361 + $0x28] sm:$0xff] %v2160
      %2459 = vst [vmem:[%s361 + $0x30] sm:$0xff] %v2165
      %2460 = vst [vmem:[%s361 + $0x38] sm:$0xff] %v2170
      %2461 = vst [vmem:[%s361 + $0x40] sm:$0xff] %v2175
      %2462 = vst [vmem:[%s361 + $0x48] sm:$0xff] %v2180
      %2463 = vst [vmem:[%s361 + $0x50] sm:$0xff] %v2185
      %2464 = vst [vmem:[%s361 + $0x58] sm:$0xff] %v2190
      %2465 = vst [vmem:[%s361 + $0x60] sm:$0xff] %v2195
      %2466 = vst [vmem:[%s361 + $0x68] sm:$0xff] %v2200
      %2467 = vst [vmem:[%s361 + $0x70] sm:$0xff] %v2205
      %2468 = vst [vmem:[%s361 + $0x78] sm:$0xff] %v2210
      %2469 = vst [vmem:[%s361 + $0x80] sm:$0xff] %v2215
      %2470 = vst [vmem:[%s361 + $0x88] sm:$0xff] %v2220
      %2471 = vst [vmem:[%s361 + $0x90] sm:$0xff] %v2225
      %2472 = vst [vmem:[%s361 + $0x98] sm:$0xff] %v2230
      %2473 = vst [vmem:[%s361 + $0xa0] sm:$0xff] %v2235
      %2474 = vst [vmem:[%s361 + $0xa8] sm:$0xff] %v2240
      %2475 = vst [vmem:[%s361 + $0xb0] sm:$0xff] %v2245
      %2476 = vst [vmem:[%s361 + $0xb8] sm:$0xff] %v2250
      %2477 = vst [vmem:[%s361 + $0xc0] sm:$0xff] %v2255
      %2478 = vst [vmem:[%s361 + $0xc8] sm:$0xff] %v2260
      %2479 = vst [vmem:[%s361 + $0xd0] sm:$0xff] %v2265
      %2480 = vst [vmem:[%s361 + $0xd8] sm:$0xff] %v2270
      %2481 = vst [vmem:[%s361 + $0xe0] sm:$0xff] %v2275
      %2482 = vst [vmem:[%s361 + $0xe8] sm:$0xff] %v2280
      %2483 = vst [vmem:[%s361 + $0xf0] sm:$0xff] %v2285
      %2484 = vst [vmem:[%s361 + $0xf8] sm:$0xff] %v2290
      %2485 = vst [vmem:[%s361 + $0x100] sm:$0xff] %v2295
      %2486 = vst [vmem:[%s361 + $0x108] sm:$0xff] %v2300
      %2487 = vst [vmem:[%s361 + $0x110] sm:$0xff] %v2305
      %2488 = vst [vmem:[%s361 + $0x118] sm:$0xff] %v2310
      %2489 = vst [vmem:[%s361 + $0x120] sm:$0xff] %v2315
      %2490 = vst [vmem:[%s361 + $0x128] sm:$0xff] %v2320
      %2491 = vst [vmem:[%s361 + $0x130] sm:$0xff] %v2325
      %2492 = vst [vmem:[%s361 + $0x138] sm:$0xff] %v2330
      %2493 = vst [vmem:[%s361 + $0x140] sm:$0xff] %v2335
      %2494 = vst [vmem:[%s361 + $0x148] sm:$0xff] %v2340
      %2495 = vst [vmem:[%s361 + $0x150] sm:$0xff] %v2345
      %2496 = vst [vmem:[%s361 + $0x158] sm:$0xff] %v2350
      %2497 = vst [vmem:[%s361 + $0x160] sm:$0xff] %v2355
      %2498 = vst [vmem:[%s361 + $0x168] sm:$0xff] %v2360
      %2499 = vst [vmem:[%s361 + $0x170] sm:$0xff] %v2365
      %2500 = vst [vmem:[%s361 + $0x178] sm:$0xff] %v2370
      %2501 = vst [vmem:[%s361 + $0x180] sm:$0xff] %v2375
      %2502 = vst [vmem:[%s361 + $0x188] sm:$0xff] %v2380
      %2503 = vst [vmem:[%s361 + $0x190] sm:$0xff] %v2385
      %2504 = vst [vmem:[%s361 + $0x198] sm:$0xff] %v2390
      %2505 = vst [vmem:[%s361 + $0x1a0] sm:$0xff] %v2395
      %2506 = vst [vmem:[%s361 + $0x1a8] sm:$0xff] %v2400
      %2507 = vst [vmem:[%s361 + $0x1b0] sm:$0xff] %v2405
      %2508 = vst [vmem:[%s361 + $0x1b8] sm:$0xff] %v2410
      %2509 = vst [vmem:[%s361 + $0x1c0] sm:$0xff] %v2415
      %2510 = vst [vmem:[%s361 + $0x1c8] sm:$0xff] %v2420
      %2511 = vst [vmem:[%s361 + $0x1d0] sm:$0xff] %v2425
      %2512 = vst [vmem:[%s361 + $0x1d8] sm:$0xff] %v2430
      %2513 = vst [vmem:[%s361 + $0x1e0] sm:$0xff] %v2435
      %2514 = vst [vmem:[%s361 + $0x1e8] sm:$0xff] %v2440
      %2515 = vst [vmem:[%s361 + $0x1f0] sm:$0xff] %v2445
      %2516 = vst [vmem:[%s361 + $0x1f8] sm:$0xff] %v2450
      %s2517 = smul.u32 64, %s21
      %p2518 = scmp.lt.s32.totalorder %s2517, 127
      %s2519 = scalar_select %p2518, %s2517, 127
      %s2520 = smul.addr %s2519, 8
      %s2521 = scalar_lea.vmem %s7, %s2520
      %s2522 = smul.u32 64, %s21
      %p2523 = scmp.lt.s32.totalorder %s2522, 127
      %s2524 = scalar_select %p2523, %s2522, 127
      %s2525 = smul.addr %s2524, 8
      %s2526 = scalar_lea.vmem %s8, %s2525
      %s2527 = smul.u32 64, %s21
      %p2528 = scmp.lt.s32.totalorder %s2527, 127
      %s2529 = scalar_select %p2528, %s2527, 127
      %s2530 = smul.addr %s2529, 8
      %s2531 = scalar_lea.vmem %s9, %s2530
      // Predicated region
      $region49: #{_fused_forward.1} parent=47 // pred_check
        %p2532 = pneg %p191
      $region50: #{_fused_forward.1} parent=47 // pred_check_branch
        %2534 = sbr.rel (%p2532) target = $region52
      $region51: #{_fused_forward.1} parent=47 // pred_region
        %s2535 = smul.u32 64, %s21
      $region52: #{_fused_forward.1} parent=47 // pred_fallthru
        _
      // Predicated region
      $region53: #{_fused_forward.1} parent=47 // pred_check
        %p2536 = pneg %p217
      $region54: #{_fused_forward.1} parent=47 // pred_check_branch
        %2538 = sbr.rel (%p2536) target = $region56
      $region55: #{_fused_forward.1} parent=47 // pred_region
        %s2539 = smul.u32 64, %s21
      $region56: #{_fused_forward.1} parent=47 // pred_fallthru
        _
      // Predicated region
      $region57: #{_fused_forward.1} parent=47 // pred_check
        %p2540 = pneg %p243
      $region58: #{_fused_forward.1} parent=47 // pred_check_branch
        %2542 = sbr.rel (%p2540) target = $region60
      $region59: #{_fused_forward.1} parent=47 // pred_region
        %s2543 = smul.u32 64, %s21
      $region60: #{_fused_forward.1} parent=47 // pred_fallthru
        _
    $region48: #{_fused_forward.1} parent=5 // pred_fallthru
      _
    %p2544 = scmp.le.s32.totalorder 2, %s16
    // Predicated region
    $region61: #{_fused_forward.1} parent=5 // pred_check
      %p2545 = pneg %p2544
    $region62: #{_fused_forward.1} parent=5 // pred_check_branch
      %2547 = sbr.rel (%p2545) target = $region64
    $region63: #{_fused_forward.1} parent=5 // pred_region
      %s2548 = ssub.s32 %s16, 2
      // Predicated region
      $region65: #{_fused_forward.1} parent=63 // pred_check
        %p2549 = pneg %p197
      $region66: #{_fused_forward.1} parent=63 // pred_check_branch
        %2551 = sbr.rel (%p2549) target = $region68
      $region67: #{_fused_forward.1} parent=63 // pred_region
        %s2552 = smul.u32 64, %s22
        %p2553 = scmp.lt.s32.totalorder %s2552, 127
        %s2554 = scalar_select %p2553, %s2552, 127
        %s2555 = smul.addr %s2554, 8
        %s2556 = scalar_lea.vmem %s7, %s2555
      $region68: #{_fused_forward.1} parent=63 // pred_fallthru
        _
      // Predicated region
      $region69: #{_fused_forward.1} parent=63 // pred_check
        %p2557 = pneg %p223
      $region70: #{_fused_forward.1} parent=63 // pred_check_branch
        %2559 = sbr.rel (%p2557) target = $region72
      $region71: #{_fused_forward.1} parent=63 // pred_region
        %s2560 = smul.u32 64, %s22
        %p2561 = scmp.lt.s32.totalorder %s2560, 127
        %s2562 = scalar_select %p2561, %s2560, 127
        %s2563 = smul.addr %s2562, 8
        %s2564 = scalar_lea.vmem %s8, %s2563
      $region72: #{_fused_forward.1} parent=63 // pred_fallthru
        _
      // Predicated region
      $region73: #{_fused_forward.1} parent=63 // pred_check
        %p2565 = pneg %p249
      $region74: #{_fused_forward.1} parent=63 // pred_check_branch
        %2567 = sbr.rel (%p2565) target = $region76
      $region75: #{_fused_forward.1} parent=63 // pred_region
        %s2568 = smul.u32 64, %s22
        %p2569 = scmp.lt.s32.totalorder %s2568, 127
        %s2570 = scalar_select %p2569, %s2568, 127
        %s2571 = smul.addr %s2570, 8
        %s2572 = scalar_lea.vmem %s9, %s2571
      $region76: #{_fused_forward.1} parent=63 // pred_fallthru
        _
    $region64: #{_fused_forward.1} parent=5 // pred_fallthru
      _
  $region6: #{_fused_forward.1} parent=0 // loop_footer
    %s20 = sadd.s32 1, %s16
  $region7: #{_fused_forward.1} parent=0 // loop_footer_branch
    %15 = sbr.rel target = $region3
  $region8: #{_fused_forward.1} parent=0 // loop_exit
    _

</llo_original>
